<compile_context>
chip_gen: v7x
topology: tpu7x:2x2x1
jax: 0.10.0
libtpu: 0.0.40
codegen_flags: <defaults>
</compile_context>

<pallas_src>
import functools
from dataclasses import dataclass

import jax
import jax.numpy as jnp
from jax import lax
from jax.experimental import pallas as pl
from jax.experimental.pallas import tpu as pltpu

EPS = float(jnp.finfo(jnp.float32).eps)


def _round_up(x, m):
    return ((x + m - 1) // m) * m


@dataclass(frozen=True)
class QConfig:
    bit: int = 8
    symmetric: bool = False
    ch_axis: int = -1                     # per-tensor
    quantizer: str = "FixedFakeQuantize"  # no 'Group'/'Token' -> clipping range used directly

    @property
    def quant_min(self) -> float:
        return float(-(2 ** (self.bit - 1))) if self.symmetric else 0.0

    @property
    def quant_max(self) -> float:
        return float(2 ** (self.bit - 1) - 1) if self.symmetric else float(2 ** self.bit - 1)


def _qparams_per_tensor(min_val, max_val, qmin, qmax, symmetric):
    """MinMaxObserver.calculate_qparams (per-tensor), vectorized over candidates (XLA)."""
    min_neg = jnp.minimum(min_val, 0.0)
    max_pos = jnp.maximum(max_val, 0.0)
    if symmetric:
        amax = jnp.maximum(-min_neg, max_pos)
        scale = jnp.maximum(amax / ((qmax - qmin) / 2.0), EPS)
        zp = jnp.zeros_like(scale)
    else:
        scale = jnp.maximum((max_pos - min_neg) / (qmax - qmin), EPS)
        zp = jnp.clip(qmin - jnp.round(min_neg / scale), qmin, qmax)
    return scale, zp


def _vmem_budget_and_limit():
    """Generation-aware VMEM sizing (v5e/v6e: 128 MiB, v7x: 64 MiB per TC)."""
    cap = 128 * 1024 * 1024
    try:
        cap = int(pltpu.get_tpu_info().vmem_capacity_bytes)
    except Exception:
        pass
    # never request the full physical VMEM; leave headroom for Mosaic-internal scratch
    limit = max(32 << 20, min(int(cap * 0.80), cap - (8 << 20)))
    budget = max(24 << 20, int(cap * 0.70))
    return budget, limit


# ----------------------------------------------------------------------------- kernels

def _candidate_loss_kernel(params_ref,   # (9, num_cand) f32 scalar-prefetch (SMEM)
                           x_ref,        # (TM, Cin)   original activation tile
                           wt_ref,       # (Cin, TN)   original W^T tile
                           cstat_r_ref,  # (2, Cin)    rows: [cmx ; cmn]
                           cstat_c_ref,  # (Cin, 2)    cols: [cmx , cmn]
                           loss_ref,     # (1, 8, num_cand_pad)  per-bn-tile loss accumulator
                           tgt_ref,      # (TM, TN) f32 VMEM scratch: fused fp32 reference tile
                           *, inv_bn):
    co = pl.program_id(1)   # Cout tile
    j = pl.program_id(2)    # candidate (innermost -> X / W^T tiles reused from VMEM)

    # zero this bn-tile's resident loss block the first time it is visited
    @pl.when((co == 0) & (j == 0))
    def _():
        loss_ref[...] = jnp.zeros_like(loss_ref)

    # fp32 reference output for this (bn, cout) tile: computed once, reused by all candidates
    @pl.when(j == 0)
    def _():
        tgt_ref[...] = jnp.dot(x_ref[...], wt_ref[...],
                               preferred_element_type=jnp.float32)

    # per-candidate scalars (precomputed in XLA, read from SMEM)
    st = params_ref[0, j]
    inv_st = params_ref[1, j]
    a_scale = params_ref[2, j]
    lo_a = params_ref[3, j]        # qa_min - a_zp
    hi_a = params_ref[4, j]        # qa_max - a_zp
    inv_w_scale = params_ref[5, j]
    lo_w = params_ref[6, j]        # qw_min - w_zp
    hi_w = params_ref[7, j]        # qw_max - w_zp
    prod_scale = params_ref[8, j]  # a_scale * w_scale
    one = jnp.float32(1.0)

    # per-input-channel migration scale (>= 1), row layout, fused with the activation
    # quant scale into ONE (1, Cin) multiplier
    cmx_r = cstat_r_ref[0:1, :]
    cmn_r = cstat_r_ref[1:2, :]
    s_row = jnp.maximum(jnp.where(cmx_r > st, cmx_r * inv_st, one),
                        jnp.where(cmn_r < -st, cmn_r * (-inv_st), one))
    inv_a = pl.reciprocal(s_row * a_scale, approx=True)          # (1, Cin)

    # same scale in column layout for the W^T rows, fused with the weight quant scale
    cmx_c = cstat_c_ref[:, 0:1]
    cmn_c = cstat_c_ref[:, 1:2]
    s_col = jnp.maximum(jnp.where(cmx_c > st, cmx_c * inv_st, one),
                        jnp.where(cmn_c < -st, cmn_c * (-inv_st), one))
    w_comb = s_col * inv_w_scale                                  # (Cin, 1)

    # integer-valued quant codes (zero-point folded into the clip bounds):
    #   code = clip(round(v/scale) + zp, qmin, qmax) - zp == clip(round(v/scale), qmin-zp, qmax-zp)
    # |code| <= 2^bit, exactly representable in bf16 -> exact MXU inputs.
    xcode = jnp.clip(jnp.round(x_ref[...] * inv_a), lo_a, hi_a)   # (TM, Cin)
    wcode = jnp.clip(jnp.round(wt_ref[...] * w_comb), lo_w, hi_w)  # (Cin, TN)

    code_mm = jnp.dot(xcode.astype(jnp.bfloat16), wcode.astype(jnp.bfloat16),
                      preferred_element_type=jnp.float32)         # (TM, TN)
    # quantized output = (a_scale * w_scale) * code_mm ; apply the scale once on the product
    diff = code_mm * prod_scale - tgt_ref[...]
    # (pred - tgt).abs().pow(2).sum(-1).mean() == sum(diff^2) / (B*N); divide each partial
    # by the *global* B*N so accumulation over tiles gives the exact mean.
    tile_loss = jnp.sum(diff * diff) * inv_bn

    # accumulate into lane j of the resident per-bn-tile loss block (one-hot masked add)
    lane = lax.broadcasted_iota(jnp.int32, loss_ref.shape, 2)
    loss_ref[...] = loss_ref[...] + jnp.where(lane == j, tile_loss, 0.0)


def _final_scale_kernel(st_ref, cmx_ref, cmn_ref, o_ref):
    st = st_ref[0]
    mx = st
    mn = -st
    one = jnp.float32(1.0)
    cmx = cmx_ref[...]
    cmn = cmn_ref[...]
    o_ref[...] = jnp.maximum(jnp.where(cmx > mx, cmx / mx, one),
                             jnp.where(cmn < mn, cmn / mn, one))


# ----------------------------------------------------------------------------- wrapper

class Migrator1DRangeSearch:
    """JAX/Pallas port of OS+ Migrator1DRangeSearch (module_type='down_proj')."""

    def __init__(self, inp, weight, a_qconfig, w_qconfig, module_type="down_proj"):
        if module_type != "down_proj":
            raise NotImplementedError("only 'down_proj' is implemented")  # TODO(synk)
        self.a_qconfig = a_qconfig
        self.w_qconfig = w_qconfig

        self.input = jnp.asarray(inp, jnp.float32)      # (B, N, Cin)
        self.weight = jnp.asarray(weight, jnp.float32)  # (Cout, Cin)
        B, N, Cin = self.input.shape
        Cout = self.weight.shape[0]
        self.BN, self.Cin, self.Cout = B * N, Cin, Cout

        # statistics (glue, matches MigratorBase.__init__)
        self.cmx = jnp.max(self.input, axis=(0, 1))                 # (Cin,)
        self.cmn = jnp.min(self.input, axis=(0, 1))                 # (Cin,)
        self.amx = float(jnp.maximum(jnp.max(self.input), 0.0))
        self.amn = float(jnp.minimum(jnp.min(self.input), 0.0))
        self.num = max(100, int(self.amx / 0.5))

        x2d = self.input.reshape(self.BN, Cin)
        wT = jnp.transpose(self.weight)                             # (Cin, Cout)

        # one-time per-Cin-row min/max of W^T (used in XLA to precompute per-candidate
        # per-tensor weight qparams; exact because the migration scale is > 0)
        self.w_rmin = jnp.min(wT, axis=1)                           # (Cin,)
        self.w_rmax = jnp.max(wT, axis=1)                           # (Cin,)

        # --- generation-aware tiling: BN and Cout are tiled, Cin stays whole -----------
        # Zero padding of BN rows / Cout columns is loss-neutral: padded activations map
        # to quant code 0 and padded weight columns produce 0 == reference.
        self._vmem_budget, self.vmem_limit = _vmem_budget_and_limit()
        self.TM, self.TN, self.BN_pad, self.Cout_pad = self._select_tiles(self._vmem_budget)
        self.x2d = jnp.pad(x2d, ((0, self.BN_pad - self.BN), (0, 0)))
        self.wT = jnp.pad(wT, ((0, 0), (0, self.Cout_pad - Cout)))

        # packed per-channel activation stats: one row-layout and one column-layout buffer
        self.cstat_r = jnp.stack([self.cmx, self.cmn], axis=0)      # (2, Cin)
        self.cstat_c = jnp.stack([self.cmx, self.cmn], axis=1)      # (Cin, 2)
        self.cmx_r = self.cmx.reshape(1, Cin)
        self.cmn_r = self.cmn.reshape(1, Cin)

    # ------------------------------------------------------------------ tile selection
    def _select_tiles(self, vmem_budget):
        BN, Cin, Cout = self.BN, self.Cin, self.Cout
        prefs = [(512, 512), (512, 256), (256, 256), (256, 128), (128, 128),
                 (64, 128), (32, 128), (16, 128), (8, 128)]
        for tm_cap, tn_cap in prefs:
            TM = min(tm_cap, _round_up(BN, 8))
            if Cout <= tn_cap:
                TN, Cout_pad = Cout, Cout
            else:
                TN, Cout_pad = tn_cap, _round_up(Cout, tn_cap)
            # f32 bytes: x tile (single-buffered) + W^T tile (double-buffered) + tgt scratch
            # + lane-padded (Cin,2) column constant + (2,Cin) row constant + small loss block
            est = 4 * (TM * Cin + 2 * Cin * TN + TM * TN + Cin * 128 + 8 * Cin) + (64 << 10)
            if est <= vmem_budget:
                return TM, TN, _round_up(BN, TM), Cout_pad
        # smallest fallback
        TM = min(8, _round_up(BN, 8))
        if Cout <= 128:
            TN, Cout_pad = Cout, Cout
        else:
            TN, Cout_pad = 128, _round_up(Cout, 128)
        return TM, TN, _round_up(BN, TM), Cout_pad

    # ------------------------------------------------------------------ qparam precompute
    def _candidate_params(self, st_arr):
        """Precompute all per-candidate scalar qparams in plain XLA -> (9, num_cand) f32."""
        qa, qw = self.a_qconfig, self.w_qconfig
        st = st_arr
        inv_st = 1.0 / st
        # activation qparams: per-tensor, clipping range (-st, st)
        a_scale, a_zp = _qparams_per_tensor(-st, st, qa.quant_min, qa.quant_max, qa.symmetric)
        # per-candidate per-channel migration scale (small: (num_cand, Cin))
        mig = jnp.maximum(
            jnp.where(self.cmx[None, :] > st[:, None], self.cmx[None, :] * inv_st[:, None], 1.0),
            jnp.where(self.cmn[None, :] < -st[:, None], self.cmn[None, :] * (-inv_st[:, None]), 1.0))
        # per-tensor min/max of the scaled weight (exact: migration scale > 0)
        w_min = jnp.minimum(jnp.min(self.w_rmin[None, :] * mig, axis=1), 0.0)
        w_max = jnp.maximum(jnp.max(self.w_rmax[None, :] * mig, axis=1), 0.0)
        w_scale, w_zp = _qparams_per_tensor(w_min, w_max, qw.quant_min, qw.quant_max, qw.symmetric)
        params = jnp.stack([
            st, inv_st,
            a_scale, qa.quant_min - a_zp, qa.quant_max - a_zp,
            1.0 / w_scale, qw.quant_min - w_zp, qw.quant_max - w_zp,
            a_scale * w_scale,
        ], axis=0)
        return params.astype(jnp.float32)

    # ------------------------------------------------------------------ candidate search
    def _run_candidate_grid(self, params, num_cand, num_cand_pad, *, single_buffer):
        TM, TN, Cin = self.TM, self.TN, self.Cin
        bn_tiles = self.BN_pad // TM
        co_tiles = self.Cout_pad // TN

        def spec(shape, index_map, slow=False):
            # single-buffer slowly-changing / constant inputs to halve their VMEM footprint
            if slow and single_buffer and hasattr(pl, "Buffered"):
                return pl.BlockSpec(shape, index_map, pipeline_mode=pl.Buffered(1))
            return pl.BlockSpec(shape, index_map)

        kernel = functools.partial(_candidate_loss_kernel, inv_bn=1.0 / float(self.BN))

        return pl.pallas_call(
            kernel,
            # per-bn-tile partial losses (sublanes are identical copies; lane-dense last dim)
            out_shape=jax.ShapeDtypeStruct((bn_tiles, 8, num_cand_pad), jnp.float32),
            grid_spec=pltpu.PrefetchScalarGridSpec(
                num_scalar_prefetch=1,
                # candidates innermost: each X / W^T tile is DMA'd once and reused from
                # VMEM by all candidates.
                grid=(bn_tiles, co_tiles, num_cand),
                in_specs=[
                    spec((TM, Cin), lambda i, co, j, p: (i, 0), slow=True),   # x tile
                    spec((Cin, TN), lambda i, co, j, p: (0, co)),             # W^T tile
                    spec((2, Cin), lambda i, co, j, p: (0, 0), slow=True),    # [cmx; cmn] rows
                    spec((Cin, 2), lambda i, co, j, p: (0, 0), slow=True),    # [cmx, cmn] cols
                ],
                # per-bn-tile resident accumulator -> the bn axis can be core-parallel
                out_specs=pl.BlockSpec((1, 8, num_cand_pad), lambda i, co, j, p: (i, 0, 0)),
                scratch_shapes=[pltpu.VMEM((TM, TN), jnp.float32)],  # fused fp32 reference tile
            ),
            compiler_params=pltpu.CompilerParams(
                # bn tiles are independent (loss partials per tile) -> megacore on v7x;
                # cout/candidate axes share the reference-tile scratch -> arbitrary.
                dimension_semantics=("parallel", "arbitrary", "arbitrary"),
                vmem_limit_bytes=self.vmem_limit,
            ),
        )(params, self.x2d, self.wT, self.cstat_r, self.cstat_c)

    def _candidate_losses(self, st_values):
        num_cand = len(st_values)
        num_cand_pad = _round_up(num_cand, 128)        # lane-dense loss vector
        st_arr = jnp.asarray(st_values, dtype=jnp.float32)
        params = self._candidate_params(st_arr)

        try:
            out = self._run_candidate_grid(params, num_cand, num_cand_pad, single_buffer=True)
        except Exception:
            # fall back to default double-buffering if pl.Buffered(1) is unsupported
            out = self._run_candidate_grid(params, num_cand, num_cand_pad, single_buffer=False)
        # sum the per-bn-tile partials (sublane 0 holds the accumulated values)
        return out[:, 0, :num_cand].sum(axis=0)

    def search_migrate_range_1D(self):
        bound_lo = 0.1
        bound_hi = max(-self.amn, self.amx)
        step = (bound_hi - bound_lo) / self.num

        # replicate the python while-loop candidate generation exactly
        st_values = []
        st = bound_hi
        while st >= bound_lo:
            st_values.append(st)
            st -= step

        if not st_values:
            return -bound_hi, bound_hi

        losses = self._candidate_losses(st_values)
        # "best_loss > loss" (strict) keeps the *first* minimum -> argmin semantics
        best_idx = int(jnp.argmin(losses))
        best_st = st_values[best_idx]
        return -best_st, best_st

    def forward(self):
        mn_range, mx_range = self.search_migrate_range_1D()
        best_scale = pl.pallas_call(
            _final_scale_kernel,
            out_shape=jax.ShapeDtypeStruct((1, self.Cin), jnp.float32),
            in_specs=[pl.BlockSpec(memory_space=pltpu.MemorySpace.SMEM),
                      pl.BlockSpec(memory_space=pltpu.MemorySpace.VMEM),
                      pl.BlockSpec(memory_space=pltpu.MemorySpace.VMEM)],
            out_specs=pl.BlockSpec(memory_space=pltpu.MemorySpace.VMEM),
        )(jnp.asarray([mx_range], jnp.float32), self.cmx_r, self.cmn_r)
        return best_scale.reshape(self.Cin)   # per-input-channel scale, shape (Cin,)


# ----------------------------------------------------------------------------- main

if __name__ == "__main__":
    key = jax.random.PRNGKey(0)
    kx, kw = jax.random.split(key)

    B, N, Cin, Cout = 2, 8, 32, 32
    x = jax.random.normal(kx, (B, N, Cin), dtype=jnp.float32) * 2.0
    # inject a couple of per-channel "outliers" so the migration search is non-trivial
    x = x.at[:, :, 3].multiply(6.0).at[:, :, 17].multiply(4.0)
    w = jax.random.normal(kw, (Cout, Cin), dtype=jnp.float32) * 0.05

    a_qconfig = QConfig(bit=8, symmetric=False, ch_axis=-1, quantizer="FixedFakeQuantize")
    w_qconfig = QConfig(bit=8, symmetric=True, ch_axis=-1, quantizer="FixedFakeQuantize")

    migrator = Migrator1DRangeSearch(x, w, a_qconfig, w_qconfig, module_type="down_proj")
    best_scale = migrator.forward()
    jax.block_until_ready(best_scale)

    assert best_scale.shape == (Cin,)
    assert bool(jnp.all(jnp.isfinite(best_scale))) and bool(jnp.all(best_scale >= 1.0))
    print("KERNEL_OK")
</pallas_src>

<mosaic_0001>
module attributes {stable_mosaic.version = 11 : i64} {
  func.func @_candidate_loss_kernel(%arg0: i32, %arg1: i32, %arg2: i32, %arg3: memref<9x100xf32, #tpu.memory_space<smem>>, %arg4: memref<16x32xf32, #tpu.memory_space<vmem>>, %arg5: memref<32x32xf32, #tpu.memory_space<vmem>>, %arg6: memref<2x32xf32, #tpu.memory_space<vmem>>, %arg7: memref<32x2xf32, #tpu.memory_space<vmem>>, %arg8: memref<1x8x128xf32, #tpu.memory_space<vmem>>, %arg9: memref<16x32xf32, #tpu.memory_space<vmem>>) attributes {dimension_semantics = [#tpu.dimension_semantics<parallel>, #tpu.dimension_semantics<arbitrary>, #tpu.dimension_semantics<arbitrary>], iteration_bounds = array<i64: 1, 1, 100>, scalar_prefetch = 1 : i64, scratch_operands = 1 : i64, tpu.core_type = #tpu.core_type<tc>, window_params = [{pipeline_mode = #tpu.pipeline_mode<synchronous>, transform_indices = @transform_0, window_bounds = array<i64: 16, 32>}, {transform_indices = @transform_1, window_bounds = array<i64: 32, 32>}, {pipeline_mode = #tpu.pipeline_mode<synchronous>, transform_indices = @transform_2, window_bounds = array<i64: 2, 32>}, {pipeline_mode = #tpu.pipeline_mode<synchronous>, transform_indices = @transform_3, window_bounds = array<i64: 32, 2>}, {transform_indices = @transform_4, window_bounds = array<i64: 1, 8, 128>}]} {
    %c0_i32 = arith.constant 0 : i32
    %0 = arith.cmpi eq, %arg1, %c0_i32 : i32
    %c0_i32_0 = arith.constant 0 : i32
    %1 = arith.cmpi eq, %arg2, %c0_i32_0 : i32
    %2 = arith.andi %0, %1 : i1
    %3 = arith.extui %2 : i1 to i32
    %c0_i32_1 = arith.constant 0 : i32
    %4 = arith.cmpi ne, %3, %c0_i32_1 : i32
    scf.if %4 {
      %cst_35 = arith.constant 0.000000e+00 : f32
      %103 = vector.broadcast %cst_35 : f32 to vector<1x8x128xf32>
      %c0_36 = arith.constant 0 : index
      %c0_37 = arith.constant 0 : index
      %c0_38 = arith.constant 0 : index
      %104 = vector.load %arg8[%c0_36, %c0_37, %c0_38] : memref<1x8x128xf32, #tpu.memory_space<vmem>>, vector<1x8x128xf32>
      tpu.vector_store %arg8[%c0_36, %c0_37, %c0_38], %103 {strides = array<i32>} : memref<1x8x128xf32, #tpu.memory_space<vmem>>, vector<1x8x128xf32>,
    } else {
    }
    %c0_i32_2 = arith.constant 0 : i32
    %5 = arith.cmpi eq, %arg2, %c0_i32_2 : i32
    %6 = arith.extui %5 : i1 to i32
    %c0_i32_3 = arith.constant 0 : i32
    %7 = arith.cmpi ne, %6, %c0_i32_3 : i32
    scf.if %7 {
      %c0_35 = arith.constant 0 : index
      %c0_36 = arith.constant 0 : index
      %103 = vector.load %arg4[%c0_35, %c0_36] : memref<16x32xf32, #tpu.memory_space<vmem>>, vector<16x32xf32>
      %c0_37 = arith.constant 0 : index
      %c0_38 = arith.constant 0 : index
      %104 = vector.load %arg5[%c0_37, %c0_38] : memref<32x32xf32, #tpu.memory_space<vmem>>, vector<32x32xf32>
      %cst_39 = arith.constant dense<0.000000e+00> : vector<16x32xf32>
      %105 = tpu.matmul %103, %104, %cst_39 {dimension_numbers = #tpu.dot_dimension_numbers<[1], [0], [0], [1], [0, 0, 1, 1], [], []>} : vector<16x32xf32>, vector<32x32xf32>, vector<16x32xf32> -> vector<16x32xf32>
      %c0_40 = arith.constant 0 : index
      %c0_41 = arith.constant 0 : index
      %106 = vector.load %arg9[%c0_40, %c0_41] : memref<16x32xf32, #tpu.memory_space<vmem>>, vector<16x32xf32>
      tpu.vector_store %arg9[%c0_40, %c0_41], %105 {strides = array<i32>} : memref<16x32xf32, #tpu.memory_space<vmem>>, vector<16x32xf32>,
    } else {
    }
    %c0 = arith.constant 0 : index
    %8 = arith.index_cast %arg2 : i32 to index
    %9 = memref.load %arg3[%c0, %8] : memref<9x100xf32, #tpu.memory_space<smem>>
    %c1 = arith.constant 1 : index
    %10 = arith.index_cast %arg2 : i32 to index
    %11 = memref.load %arg3[%c1, %10] : memref<9x100xf32, #tpu.memory_space<smem>>
    %c2 = arith.constant 2 : index
    %12 = arith.index_cast %arg2 : i32 to index
    %13 = memref.load %arg3[%c2, %12] : memref<9x100xf32, #tpu.memory_space<smem>>
    %c3 = arith.constant 3 : index
    %14 = arith.index_cast %arg2 : i32 to index
    %15 = memref.load %arg3[%c3, %14] : memref<9x100xf32, #tpu.memory_space<smem>>
    %c4 = arith.constant 4 : index
    %16 = arith.index_cast %arg2 : i32 to index
    %17 = memref.load %arg3[%c4, %16] : memref<9x100xf32, #tpu.memory_space<smem>>
    %c5 = arith.constant 5 : index
    %18 = arith.index_cast %arg2 : i32 to index
    %19 = memref.load %arg3[%c5, %18] : memref<9x100xf32, #tpu.memory_space<smem>>
    %c6 = arith.constant 6 : index
    %20 = arith.index_cast %arg2 : i32 to index
    %21 = memref.load %arg3[%c6, %20] : memref<9x100xf32, #tpu.memory_space<smem>>
    %c7 = arith.constant 7 : index
    %22 = arith.index_cast %arg2 : i32 to index
    %23 = memref.load %arg3[%c7, %22] : memref<9x100xf32, #tpu.memory_space<smem>>
    %c8 = arith.constant 8 : index
    %24 = arith.index_cast %arg2 : i32 to index
    %25 = memref.load %arg3[%c8, %24] : memref<9x100xf32, #tpu.memory_space<smem>>
    %c0_4 = arith.constant 0 : index
    %c0_5 = arith.constant 0 : index
    %26 = vector.load %arg6[%c0_4, %c0_5] : memref<2x32xf32, #tpu.memory_space<vmem>>, vector<1x32xf32>
    %c1_6 = arith.constant 1 : index
    %c0_7 = arith.constant 0 : index
    %27 = vector.load %arg6[%c1_6, %c0_7] : memref<2x32xf32, #tpu.memory_space<vmem>>, vector<1x32xf32>
    %28 = vector.broadcast %9 : f32 to vector<1x32xf32>
    %29 = arith.cmpf ogt, %26, %28 : vector<1x32xf32>
    %30 = vector.broadcast %11 : f32 to vector<1x32xf32>
    %31 = arith.mulf %26, %30 : vector<1x32xf32>
    %cst = arith.constant 1.000000e+00 : f32
    %32 = vector.broadcast %cst : f32 to vector<1x32xf32>
    %33 = arith.select %29, %31, %32 : vector<1x32xi1>, vector<1x32xf32>
    %cst_8 = arith.constant 0.000000e+00 : f32
    %34 = arith.subf %cst_8, %9 : f32
    %35 = vector.broadcast %34 : f32 to vector<1x32xf32>
    %36 = arith.cmpf olt, %27, %35 : vector<1x32xf32>
    %cst_9 = arith.constant 0.000000e+00 : f32
    %37 = arith.subf %cst_9, %11 : f32
    %38 = vector.broadcast %37 : f32 to vector<1x32xf32>
    %39 = arith.mulf %27, %38 : vector<1x32xf32>
    %cst_10 = arith.constant 1.000000e+00 : f32
    %40 = vector.broadcast %cst_10 : f32 to vector<1x32xf32>
    %41 = arith.select %36, %39, %40 : vector<1x32xi1>, vector<1x32xf32>
    %42 = arith.maximumf %33, %41 : vector<1x32xf32>
    %43 = vector.broadcast %13 : f32 to vector<1x32xf32>
    %44 = arith.mulf %42, %43 : vector<1x32xf32>
    %45 = tpu.reciprocal %44 {approx = true} : vector<1x32xf32> -> vector<1x32xf32>
    %c0_11 = arith.constant 0 : index
    %c0_12 = arith.constant 0 : index
    %46 = vector.load %arg7[%c0_11, %c0_12] : memref<32x2xf32, #tpu.memory_space<vmem>>, vector<32x1xf32>
    %c0_13 = arith.constant 0 : index
    %c1_14 = arith.constant 1 : index
    %47 = vector.load %arg7[%c0_13, %c1_14] : memref<32x2xf32, #tpu.memory_space<vmem>>, vector<32x1xf32>
    %48 = vector.broadcast %9 : f32 to vector<32x1xf32>
    %49 = arith.cmpf ogt, %46, %48 : vector<32x1xf32>
    %50 = vector.broadcast %11 : f32 to vector<32x1xf32>
    %51 = arith.mulf %46, %50 : vector<32x1xf32>
    %cst_15 = arith.constant 1.000000e+00 : f32
    %52 = vector.broadcast %cst_15 : f32 to vector<32x1xf32>
    %53 = arith.select %49, %51, %52 : vector<32x1xi1>, vector<32x1xf32>
    %cst_16 = arith.constant 0.000000e+00 : f32
    %54 = arith.subf %cst_16, %9 : f32
    %55 = vector.broadcast %54 : f32 to vector<32x1xf32>
    %56 = arith.cmpf olt, %47, %55 : vector<32x1xf32>
    %cst_17 = arith.constant 0.000000e+00 : f32
    %57 = arith.subf %cst_17, %11 : f32
    %58 = vector.broadcast %57 : f32 to vector<32x1xf32>
    %59 = arith.mulf %47, %58 : vector<32x1xf32>
    %cst_18 = arith.constant 1.000000e+00 : f32
    %60 = vector.broadcast %cst_18 : f32 to vector<32x1xf32>
    %61 = arith.select %56, %59, %60 : vector<32x1xi1>, vector<32x1xf32>
    %62 = arith.maximumf %53, %61 : vector<32x1xf32>
    %63 = vector.broadcast %19 : f32 to vector<32x1xf32>
    %64 = arith.mulf %62, %63 : vector<32x1xf32>
    %c0_19 = arith.constant 0 : index
    %c0_20 = arith.constant 0 : index
    %65 = vector.load %arg4[%c0_19, %c0_20] : memref<16x32xf32, #tpu.memory_space<vmem>>, vector<16x32xf32>
    %66 = vector.broadcast %45 : vector<1x32xf32> to vector<16x32xf32>
    %67 = arith.mulf %65, %66 : vector<16x32xf32>
    %68 = math.roundeven %67 : vector<16x32xf32>
    %69 = vector.broadcast %15 : f32 to vector<16x32xf32>
    %70 = arith.maximumf %69, %68 : vector<16x32xf32>
    %71 = vector.broadcast %17 : f32 to vector<16x32xf32>
    %72 = arith.minimumf %71, %70 : vector<16x32xf32>
    %c0_21 = arith.constant 0 : index
    %c0_22 = arith.constant 0 : index
    %73 = vector.load %arg5[%c0_21, %c0_22] : memref<32x32xf32, #tpu.memory_space<vmem>>, vector<32x32xf32>
    %74 = vector.broadcast %64 : vector<32x1xf32> to vector<32x32xf32>
    %75 = arith.mulf %73, %74 : vector<32x32xf32>
    %76 = math.roundeven %75 : vector<32x32xf32>
    %77 = vector.broadcast %21 : f32 to vector<32x32xf32>
    %78 = arith.maximumf %77, %76 : vector<32x32xf32>
    %79 = vector.broadcast %23 : f32 to vector<32x32xf32>
    %80 = arith.minimumf %79, %78 : vector<32x32xf32>
    %81 = arith.truncf %72 : vector<16x32xf32> to vector<16x32xbf16>
    %82 = arith.truncf %80 : vector<32x32xf32> to vector<32x32xbf16>
    %cst_23 = arith.constant dense<0.000000e+00> : vector<16x32xf32>
    %83 = tpu.matmul %81, %82, %cst_23 {dimension_numbers = #tpu.dot_dimension_numbers<[1], [0], [0], [1], [0, 0, 1, 1], [], []>} : vector<16x32xbf16>, vector<32x32xbf16>, vector<16x32xf32> -> vector<16x32xf32>
    %84 = vector.broadcast %25 : f32 to vector<16x32xf32>
    %85 = arith.mulf %83, %84 : vector<16x32xf32>
    %c0_24 = arith.constant 0 : index
    %c0_25 = arith.constant 0 : index
    %86 = vector.load %arg9[%c0_24, %c0_25] : memref<16x32xf32, #tpu.memory_space<vmem>>, vector<16x32xf32>
    %87 = arith.subf %85, %86 : vector<16x32xf32>
    %88 = arith.mulf %87, %87 : vector<16x32xf32>
    %89 = vector.shape_cast %88 : vector<16x32xf32> to vector<1x16x32xf32>
    %cst_26 = arith.constant dense<0.000000e+00> : vector<1xf32>
    %90 = vector.multi_reduction <add>, %89, %cst_26 [1, 2] : vector<1x16x32xf32> to vector<1xf32>
    %91 = vector.shape_cast %90 : vector<1xf32> to vector<1x1x1xf32>
    %92 = vector.extract %91[0, 0, 0] : f32 from vector<1x1x1xf32>
    %cst_27 = arith.constant 6.250000e-02 : f32
    %93 = arith.mulf %92, %cst_27 : f32
    %94 = tpu.iota {dimensions = array<i32: 2>} : vector<1x8x128xi32>
    %c0_28 = arith.constant 0 : index
    %c0_29 = arith.constant 0 : index
    %c0_30 = arith.constant 0 : index
    %95 = vector.load %arg8[%c0_28, %c0_29, %c0_30] : memref<1x8x128xf32, #tpu.memory_space<vmem>>, vector<1x8x128xf32>
    %96 = vector.broadcast %arg2 : i32 to vector<1x8x128xi32>
    %97 = arith.cmpi eq, %94, %96 : vector<1x8x128xi32>
    %cst_31 = arith.constant 0.000000e+00 : f32
    %98 = vector.broadcast %93 : f32 to vector<1x8x128xf32>
    %99 = vector.broadcast %cst_31 : f32 to vector<1x8x128xf32>
    %100 = arith.select %97, %98, %99 : vector<1x8x128xi1>, vector<1x8x128xf32>
    %101 = arith.addf %95, %100 : vector<1x8x128xf32>
    %c0_32 = arith.constant 0 : index
    %c0_33 = arith.constant 0 : index
    %c0_34 = arith.constant 0 : index
    %102 = vector.load %arg8[%c0_32, %c0_33, %c0_34] : memref<1x8x128xf32, #tpu.memory_space<vmem>>, vector<1x8x128xf32>
    tpu.vector_store %arg8[%c0_32, %c0_33, %c0_34], %101 {strides = array<i32>} : memref<1x8x128xf32, #tpu.memory_space<vmem>>, vector<1x8x128xf32>,
    return
  }
  func.func @transform_0(%arg0: i32, %arg1: i32, %arg2: i32, %arg3: memref<9x100xf32, #tpu.memory_space<smem>>) -> (i32, i32) {
    %c0_i32 = arith.constant 0 : i32
    %c0_i32_0 = arith.constant 0 : i32
    return %arg0, %c0_i32 : i32, i32
  }
  func.func @transform_1(%arg0: i32, %arg1: i32, %arg2: i32, %arg3: memref<9x100xf32, #tpu.memory_space<smem>>) -> (i32, i32) {
    %c0_i32 = arith.constant 0 : i32
    %c0_i32_0 = arith.constant 0 : i32
    return %c0_i32, %arg1 : i32, i32
  }
  func.func @transform_2(%arg0: i32, %arg1: i32, %arg2: i32, %arg3: memref<9x100xf32, #tpu.memory_space<smem>>) -> (i32, i32) {
    %c0_i32 = arith.constant 0 : i32
    %c0_i32_0 = arith.constant 0 : i32
    %c0_i32_1 = arith.constant 0 : i32
    return %c0_i32, %c0_i32_0 : i32, i32
  }
  func.func @transform_3(%arg0: i32, %arg1: i32, %arg2: i32, %arg3: memref<9x100xf32, #tpu.memory_space<smem>>) -> (i32, i32) {
    %c0_i32 = arith.constant 0 : i32
    %c0_i32_0 = arith.constant 0 : i32
    %c0_i32_1 = arith.constant 0 : i32
    return %c0_i32, %c0_i32_0 : i32, i32
  }
  func.func @transform_4(%arg0: i32, %arg1: i32, %arg2: i32, %arg3: memref<9x100xf32, #tpu.memory_space<smem>>) -> (i32, i32, i32) {
    %c0_i32 = arith.constant 0 : i32
    %c0_i32_0 = arith.constant 0 : i32
    %c0_i32_1 = arith.constant 0 : i32
    return %arg0, %c0_i32, %c0_i32_0 : i32, i32, i32
  }
}

module attributes {stable_mosaic.version = 11 : i64} {
  func.func @_candidate_loss_kernel(%arg0: i32, %arg1: i32, %arg2: i32, %arg3: memref<9x100xf32, #tpu.memory_space<smem>>, %arg4: memref<16x32xf32, #tpu.memory_space<vmem>>, %arg5: memref<32x32xf32, #tpu.memory_space<vmem>>, %arg6: memref<2x32xf32, #tpu.memory_space<vmem>>, %arg7: memref<32x2xf32, #tpu.memory_space<vmem>>, %arg8: memref<1x8x128xf32, #tpu.memory_space<vmem>>, %arg9: memref<16x32xf32, #tpu.memory_space<vmem>>) attributes {dimension_semantics = [#tpu.dimension_semantics<parallel>, #tpu.dimension_semantics<arbitrary>, #tpu.dimension_semantics<arbitrary>], iteration_bounds = array<i64: 1, 1, 100>, scalar_prefetch = 1 : i64, scratch_operands = 1 : i64, tpu.core_type = #tpu.core_type<tc>, window_params = [{transform_indices = @transform_0, window_bounds = array<i64: 16, 32>}, {transform_indices = @transform_1, window_bounds = array<i64: 32, 32>}, {pipeline_mode = #tpu.pipeline_mode<synchronous>, transform_indices = @transform_2, window_bounds = array<i64: 2, 32>}, {pipeline_mode = #tpu.pipeline_mode<synchronous>, transform_indices = @transform_3, window_bounds = array<i64: 32, 2>}, {transform_indices = @transform_4, window_bounds = array<i64: 1, 8, 128>}]} {
    %c0_i32 = arith.constant 0 : i32
    %0 = arith.cmpi eq, %arg1, %c0_i32 : i32
    %c0_i32_0 = arith.constant 0 : i32
    %1 = arith.cmpi eq, %arg2, %c0_i32_0 : i32
    %2 = arith.andi %0, %1 : i1
    %3 = arith.extui %2 : i1 to i32
    %c0_i32_1 = arith.constant 0 : i32
    %4 = arith.cmpi ne, %3, %c0_i32_1 : i32
    scf.if %4 {
      %cst_35 = arith.constant 0.000000e+00 : f32
      %103 = vector.broadcast %cst_35 : f32 to vector<1x8x128xf32>
      %c0_36 = arith.constant 0 : index
      %c0_37 = arith.constant 0 : index
      %c0_38 = arith.constant 0 : index
      %104 = vector.load %arg8[%c0_36, %c0_37, %c0_38] : memref<1x8x128xf32, #tpu.memory_space<vmem>>, vector<1x8x128xf32>
      tpu.vector_store %arg8[%c0_36, %c0_37, %c0_38], %103 {strides = array<i32>} : memref<1x8x128xf32, #tpu.memory_space<vmem>>, vector<1x8x128xf32>,
    } else {
    }
    %c0_i32_2 = arith.constant 0 : i32
    %5 = arith.cmpi eq, %arg2, %c0_i32_2 : i32
    %6 = arith.extui %5 : i1 to i32
    %c0_i32_3 = arith.constant 0 : i32
    %7 = arith.cmpi ne, %6, %c0_i32_3 : i32
    scf.if %7 {
      %c0_35 = arith.constant 0 : index
      %c0_36 = arith.constant 0 : index
      %103 = vector.load %arg4[%c0_35, %c0_36] : memref<16x32xf32, #tpu.memory_space<vmem>>, vector<16x32xf32>
      %c0_37 = arith.constant 0 : index
      %c0_38 = arith.constant 0 : index
      %104 = vector.load %arg5[%c0_37, %c0_38] : memref<32x32xf32, #tpu.memory_space<vmem>>, vector<32x32xf32>
      %cst_39 = arith.constant dense<0.000000e+00> : vector<16x32xf32>
      %105 = tpu.matmul %103, %104, %cst_39 {dimension_numbers = #tpu.dot_dimension_numbers<[1], [0], [0], [1], [0, 0, 1, 1], [], []>} : vector<16x32xf32>, vector<32x32xf32>, vector<16x32xf32> -> vector<16x32xf32>
      %c0_40 = arith.constant 0 : index
      %c0_41 = arith.constant 0 : index
      %106 = vector.load %arg9[%c0_40, %c0_41] : memref<16x32xf32, #tpu.memory_space<vmem>>, vector<16x32xf32>
      tpu.vector_store %arg9[%c0_40, %c0_41], %105 {strides = array<i32>} : memref<16x32xf32, #tpu.memory_space<vmem>>, vector<16x32xf32>,
    } else {
    }
    %c0 = arith.constant 0 : index
    %8 = arith.index_cast %arg2 : i32 to index
    %9 = memref.load %arg3[%c0, %8] : memref<9x100xf32, #tpu.memory_space<smem>>
    %c1 = arith.constant 1 : index
    %10 = arith.index_cast %arg2 : i32 to index
    %11 = memref.load %arg3[%c1, %10] : memref<9x100xf32, #tpu.memory_space<smem>>
    %c2 = arith.constant 2 : index
    %12 = arith.index_cast %arg2 : i32 to index
    %13 = memref.load %arg3[%c2, %12] : memref<9x100xf32, #tpu.memory_space<smem>>
    %c3 = arith.constant 3 : index
    %14 = arith.index_cast %arg2 : i32 to index
    %15 = memref.load %arg3[%c3, %14] : memref<9x100xf32, #tpu.memory_space<smem>>
    %c4 = arith.constant 4 : index
    %16 = arith.index_cast %arg2 : i32 to index
    %17 = memref.load %arg3[%c4, %16] : memref<9x100xf32, #tpu.memory_space<smem>>
    %c5 = arith.constant 5 : index
    %18 = arith.index_cast %arg2 : i32 to index
    %19 = memref.load %arg3[%c5, %18] : memref<9x100xf32, #tpu.memory_space<smem>>
    %c6 = arith.constant 6 : index
    %20 = arith.index_cast %arg2 : i32 to index
    %21 = memref.load %arg3[%c6, %20] : memref<9x100xf32, #tpu.memory_space<smem>>
    %c7 = arith.constant 7 : index
    %22 = arith.index_cast %arg2 : i32 to index
    %23 = memref.load %arg3[%c7, %22] : memref<9x100xf32, #tpu.memory_space<smem>>
    %c8 = arith.constant 8 : index
    %24 = arith.index_cast %arg2 : i32 to index
    %25 = memref.load %arg3[%c8, %24] : memref<9x100xf32, #tpu.memory_space<smem>>
    %c0_4 = arith.constant 0 : index
    %c0_5 = arith.constant 0 : index
    %26 = vector.load %arg6[%c0_4, %c0_5] : memref<2x32xf32, #tpu.memory_space<vmem>>, vector<1x32xf32>
    %c1_6 = arith.constant 1 : index
    %c0_7 = arith.constant 0 : index
    %27 = vector.load %arg6[%c1_6, %c0_7] : memref<2x32xf32, #tpu.memory_space<vmem>>, vector<1x32xf32>
    %28 = vector.broadcast %9 : f32 to vector<1x32xf32>
    %29 = arith.cmpf ogt, %26, %28 : vector<1x32xf32>
    %30 = vector.broadcast %11 : f32 to vector<1x32xf32>
    %31 = arith.mulf %26, %30 : vector<1x32xf32>
    %cst = arith.constant 1.000000e+00 : f32
    %32 = vector.broadcast %cst : f32 to vector<1x32xf32>
    %33 = arith.select %29, %31, %32 : vector<1x32xi1>, vector<1x32xf32>
    %cst_8 = arith.constant 0.000000e+00 : f32
    %34 = arith.subf %cst_8, %9 : f32
    %35 = vector.broadcast %34 : f32 to vector<1x32xf32>
    %36 = arith.cmpf olt, %27, %35 : vector<1x32xf32>
    %cst_9 = arith.constant 0.000000e+00 : f32
    %37 = arith.subf %cst_9, %11 : f32
    %38 = vector.broadcast %37 : f32 to vector<1x32xf32>
    %39 = arith.mulf %27, %38 : vector<1x32xf32>
    %cst_10 = arith.constant 1.000000e+00 : f32
    %40 = vector.broadcast %cst_10 : f32 to vector<1x32xf32>
    %41 = arith.select %36, %39, %40 : vector<1x32xi1>, vector<1x32xf32>
    %42 = arith.maximumf %33, %41 : vector<1x32xf32>
    %43 = vector.broadcast %13 : f32 to vector<1x32xf32>
    %44 = arith.mulf %42, %43 : vector<1x32xf32>
    %45 = tpu.reciprocal %44 {approx = true} : vector<1x32xf32> -> vector<1x32xf32>
    %c0_11 = arith.constant 0 : index
    %c0_12 = arith.constant 0 : index
    %46 = vector.load %arg7[%c0_11, %c0_12] : memref<32x2xf32, #tpu.memory_space<vmem>>, vector<32x1xf32>
    %c0_13 = arith.constant 0 : index
    %c1_14 = arith.constant 1 : index
    %47 = vector.load %arg7[%c0_13, %c1_14] : memref<32x2xf32, #tpu.memory_space<vmem>>, vector<32x1xf32>
    %48 = vector.broadcast %9 : f32 to vector<32x1xf32>
    %49 = arith.cmpf ogt, %46, %48 : vector<32x1xf32>
    %50 = vector.broadcast %11 : f32 to vector<32x1xf32>
    %51 = arith.mulf %46, %50 : vector<32x1xf32>
    %cst_15 = arith.constant 1.000000e+00 : f32
    %52 = vector.broadcast %cst_15 : f32 to vector<32x1xf32>
    %53 = arith.select %49, %51, %52 : vector<32x1xi1>, vector<32x1xf32>
    %cst_16 = arith.constant 0.000000e+00 : f32
    %54 = arith.subf %cst_16, %9 : f32
    %55 = vector.broadcast %54 : f32 to vector<32x1xf32>
    %56 = arith.cmpf olt, %47, %55 : vector<32x1xf32>
    %cst_17 = arith.constant 0.000000e+00 : f32
    %57 = arith.subf %cst_17, %11 : f32
    %58 = vector.broadcast %57 : f32 to vector<32x1xf32>
    %59 = arith.mulf %47, %58 : vector<32x1xf32>
    %cst_18 = arith.constant 1.000000e+00 : f32
    %60 = vector.broadcast %cst_18 : f32 to vector<32x1xf32>
    %61 = arith.select %56, %59, %60 : vector<32x1xi1>, vector<32x1xf32>
    %62 = arith.maximumf %53, %61 : vector<32x1xf32>
    %63 = vector.broadcast %19 : f32 to vector<32x1xf32>
    %64 = arith.mulf %62, %63 : vector<32x1xf32>
    %c0_19 = arith.constant 0 : index
    %c0_20 = arith.constant 0 : index
    %65 = vector.load %arg4[%c0_19, %c0_20] : memref<16x32xf32, #tpu.memory_space<vmem>>, vector<16x32xf32>
    %66 = vector.broadcast %45 : vector<1x32xf32> to vector<16x32xf32>
    %67 = arith.mulf %65, %66 : vector<16x32xf32>
    %68 = math.roundeven %67 : vector<16x32xf32>
    %69 = vector.broadcast %15 : f32 to vector<16x32xf32>
    %70 = arith.maximumf %69, %68 : vector<16x32xf32>
    %71 = vector.broadcast %17 : f32 to vector<16x32xf32>
    %72 = arith.minimumf %71, %70 : vector<16x32xf32>
    %c0_21 = arith.constant 0 : index
    %c0_22 = arith.constant 0 : index
    %73 = vector.load %arg5[%c0_21, %c0_22] : memref<32x32xf32, #tpu.memory_space<vmem>>, vector<32x32xf32>
    %74 = vector.broadcast %64 : vector<32x1xf32> to vector<32x32xf32>
    %75 = arith.mulf %73, %74 : vector<32x32xf32>
    %76 = math.roundeven %75 : vector<32x32xf32>
    %77 = vector.broadcast %21 : f32 to vector<32x32xf32>
    %78 = arith.maximumf %77, %76 : vector<32x32xf32>
    %79 = vector.broadcast %23 : f32 to vector<32x32xf32>
    %80 = arith.minimumf %79, %78 : vector<32x32xf32>
    %81 = arith.truncf %72 : vector<16x32xf32> to vector<16x32xbf16>
    %82 = arith.truncf %80 : vector<32x32xf32> to vector<32x32xbf16>
    %cst_23 = arith.constant dense<0.000000e+00> : vector<16x32xf32>
    %83 = tpu.matmul %81, %82, %cst_23 {dimension_numbers = #tpu.dot_dimension_numbers<[1], [0], [0], [1], [0, 0, 1, 1], [], []>} : vector<16x32xbf16>, vector<32x32xbf16>, vector<16x32xf32> -> vector<16x32xf32>
    %84 = vector.broadcast %25 : f32 to vector<16x32xf32>
    %85 = arith.mulf %83, %84 : vector<16x32xf32>
    %c0_24 = arith.constant 0 : index
    %c0_25 = arith.constant 0 : index
    %86 = vector.load %arg9[%c0_24, %c0_25] : memref<16x32xf32, #tpu.memory_space<vmem>>, vector<16x32xf32>
    %87 = arith.subf %85, %86 : vector<16x32xf32>
    %88 = arith.mulf %87, %87 : vector<16x32xf32>
    %89 = vector.shape_cast %88 : vector<16x32xf32> to vector<1x16x32xf32>
    %cst_26 = arith.constant dense<0.000000e+00> : vector<1xf32>
    %90 = vector.multi_reduction <add>, %89, %cst_26 [1, 2] : vector<1x16x32xf32> to vector<1xf32>
    %91 = vector.shape_cast %90 : vector<1xf32> to vector<1x1x1xf32>
    %92 = vector.extract %91[0, 0, 0] : f32 from vector<1x1x1xf32>
    %cst_27 = arith.constant 6.250000e-02 : f32
    %93 = arith.mulf %92, %cst_27 : f32
    %94 = tpu.iota {dimensions = array<i32: 2>} : vector<1x8x128xi32>
    %c0_28 = arith.constant 0 : index
    %c0_29 = arith.constant 0 : index
    %c0_30 = arith.constant 0 : index
    %95 = vector.load %arg8[%c0_28, %c0_29, %c0_30] : memref<1x8x128xf32, #tpu.memory_space<vmem>>, vector<1x8x128xf32>
    %96 = vector.broadcast %arg2 : i32 to vector<1x8x128xi32>
    %97 = arith.cmpi eq, %94, %96 : vector<1x8x128xi32>
    %cst_31 = arith.constant 0.000000e+00 : f32
    %98 = vector.broadcast %93 : f32 to vector<1x8x128xf32>
    %99 = vector.broadcast %cst_31 : f32 to vector<1x8x128xf32>
    %100 = arith.select %97, %98, %99 : vector<1x8x128xi1>, vector<1x8x128xf32>
    %101 = arith.addf %95, %100 : vector<1x8x128xf32>
    %c0_32 = arith.constant 0 : index
    %c0_33 = arith.constant 0 : index
    %c0_34 = arith.constant 0 : index
    %102 = vector.load %arg8[%c0_32, %c0_33, %c0_34] : memref<1x8x128xf32, #tpu.memory_space<vmem>>, vector<1x8x128xf32>
    tpu.vector_store %arg8[%c0_32, %c0_33, %c0_34], %101 {strides = array<i32>} : memref<1x8x128xf32, #tpu.memory_space<vmem>>, vector<1x8x128xf32>,
    return
  }
  func.func @transform_0(%arg0: i32, %arg1: i32, %arg2: i32, %arg3: memref<9x100xf32, #tpu.memory_space<smem>>) -> (i32, i32) {
    %c0_i32 = arith.constant 0 : i32
    %c0_i32_0 = arith.constant 0 : i32
    return %arg0, %c0_i32 : i32, i32
  }
  func.func @transform_1(%arg0: i32, %arg1: i32, %arg2: i32, %arg3: memref<9x100xf32, #tpu.memory_space<smem>>) -> (i32, i32) {
    %c0_i32 = arith.constant 0 : i32
    %c0_i32_0 = arith.constant 0 : i32
    return %c0_i32, %arg1 : i32, i32
  }
  func.func @transform_2(%arg0: i32, %arg1: i32, %arg2: i32, %arg3: memref<9x100xf32, #tpu.memory_space<smem>>) -> (i32, i32) {
    %c0_i32 = arith.constant 0 : i32
    %c0_i32_0 = arith.constant 0 : i32
    %c0_i32_1 = arith.constant 0 : i32
    return %c0_i32, %c0_i32_0 : i32, i32
  }
  func.func @transform_3(%arg0: i32, %arg1: i32, %arg2: i32, %arg3: memref<9x100xf32, #tpu.memory_space<smem>>) -> (i32, i32) {
    %c0_i32 = arith.constant 0 : i32
    %c0_i32_0 = arith.constant 0 : i32
    %c0_i32_1 = arith.constant 0 : i32
    return %c0_i32, %c0_i32_0 : i32, i32
  }
  func.func @transform_4(%arg0: i32, %arg1: i32, %arg2: i32, %arg3: memref<9x100xf32, #tpu.memory_space<smem>>) -> (i32, i32, i32) {
    %c0_i32 = arith.constant 0 : i32
    %c0_i32_0 = arith.constant 0 : i32
    %c0_i32_1 = arith.constant 0 : i32
    return %arg0, %c0_i32, %c0_i32_0 : i32, i32, i32
  }
}

</mosaic_0001>

<llo_original>
// kernel: tpu_custom_call.1
$region0: #{tpu_custom_call.1}
  #allocation0 [shape = 'u32[]', space=smem, size = 0x4, offset = 0x4, fixed_abs, tag = 'smem constant byte address 0x4 - core index']
  #allocation1 [shape = 'u32[144,128]{1,0:T(1,128)}', space=vmem, size = 0x12000, scoped, tag = 'internal scratch']
  #allocation2 [shape = 'f32[16,32]{1,0:T(8,128)}', space=vmem, size = 0x2000, scoped, tag = 'scratch operand']
  #allocation3 [shape = 's32[1]{0}', space=sflag, size = 0x4, scoped, tag = 'scoped memory for tpu_custom_call.1']
  #allocation4 [shape = 'u8[8192]{0}', space=smem, size = 0x2000, scoped, tag = 'prefetched SMEM operand 0']
  %s0 = inlined_call_operand.hbm [shape: f32[9,100], index: 0, kind: input, shape index: {}]
  %s1 = inlined_call_operand.hbm [shape: f32[16,32], index: 1, kind: input, shape index: {}]
  %s2 = inlined_call_operand.hbm [shape: f32[32,32], index: 2, kind: input, shape index: {}]
  %s3 = inlined_call_operand.hbm [shape: f32[2,32], index: 3, kind: input, shape index: {}]
  %s4 = inlined_call_operand.hbm [shape: f32[32,2], index: 4, kind: input, shape index: {}]
  %s5 = inlined_call_operand.hbm [shape: f32[1,8,128], index: 5, kind: output, shape index: {}]
  %s6 = sld [smem:[#allocation0]]
  $region73: #{tpu_custom_call.1} parent=0
    _
  %s8 = ssub.s32 1, %s6
  %s9 = scalar_select 0, %s8, %s6
  %11 = dma.hbm_to_smem %s0, 256, [#allocation4], [#allocation3]
  %12 = dma.done [#allocation3], 256
  %13 = sfence
  $region1: #{tpu_custom_call.1} parent=0
    #allocation5 [shape = 'u8[8192]{0}', space=vmem, size = 0x2000, scoped, tag = 'input window, operand 1, single buffered']
    #allocation6 [shape = 's32[2]{0}', space=sflag, size = 0x8, scoped, tag = 'scoped memory for tpu_custom_call.1']
    #allocation7 [shape = 's32[2]{0}', space=sflag, size = 0x8, scoped, tag = 'scoped memory for tpu_custom_call.1']
    #allocation8 [shape = 'u8[16384]{0}', space=vmem, size = 0x4000, scoped, tag = 'input window, operand 2, single buffered']
    #allocation9 [shape = 's32[1]{0}', space=sflag, size = 0x4, scoped, tag = 'scoped memory for tpu_custom_call.1']
    #allocation10 [shape = 'u8[1024]{0}', space=vmem, size = 0x400, scoped, tag = 'input window, operand 3, single buffered']
    #allocation11 [shape = 'u8[16384]{0}', space=vmem, size = 0x4000, scoped, tag = 'input window, operand 4, single buffered']
    #allocation12 [shape = 's32[1]{0}', space=sflag, size = 0x4, scoped, tag = 'scoped memory for tpu_custom_call.1']
    #allocation13 [shape = 'u8[4096]{0}', space=vmem, size = 0x1000, scoped, tag = 'output window, operand 0, single buffered']
    %14 = vsyncpa [#allocation6], 0
    %15 = vsyncpa [#allocation9], 0
    %16 = vsyncpa [#allocation12], 0
    %17 = vsyncpa [#allocation7], 0
    loop: start=0, step=1, limit=102
    $region2: #{tpu_custom_call.1} parent=1 // loop_pre_header
      _
    $region3: #{tpu_custom_call.1} parent=1 // loop_header
      %s19 = sphi 0, %s23
      %p20 = scmp.ge.s32.totalorder %s19, 102
      %s26 = sphi 0, %s45
      %s27 = sphi 0, %s41
      %s28 = sphi 0, %s37
      %s29 = sphi 0, %s26
      %s30 = sphi 0, %s27
      %s31 = sphi 0, %s28
      %s32 = sphi 0, %s29
      %s33 = sphi 0, %s30
      %s34 = sphi 0, %s31
      %s48 = sphi 0, %s50
      %s51 = sphi 0, %s48
      %s52 = sphi 0, %s51
      %s68 = sphi 0, %s52
      %s74 = sphi 0, %s76
      %s77 = sphi 0, %s74
      %s78 = sphi 0, %s77
      %s94 = sphi 0, %s78
      %s98 = sphi 0, %s98
      %s100 = sphi 0, %s98
      %s101 = sphi 0, %s100
      %s115 = sphi 0, %s101
      %s119 = sphi 0, %s119
      %s121 = sphi 0, %s119
      %s122 = sphi 0, %s121
      %s136 = sphi 0, %s122
      %s142 = sphi 0, %s144
      %s145 = sphi 0, %s142
      %s146 = sphi 0, %s145
      %s162 = sphi 0, %s146
    $region4: #{tpu_custom_call.1} parent=1 // loop_header_branch
      %22 = sbr.rel (%p20) target = $region8
    $region5: #{tpu_custom_call.1} parent=1 // loop_body
      %s24 = ssub.s32 %s19, 1
      %s25 = ssub.s32 %s19, 2
      %s35 = sadd.s32 1, %s28
      %p36 = scmp.ge.s32.totalorder %s35, 100
      %s37 = scalar_select %p36, 0, %s35
      %s38 = sadd.s32 1, %s27
      %s39 = scalar_select %p36, %s38, %s27
      %p40 = scmp.ge.s32.totalorder %s39, 1
      %s41 = scalar_select %p40, 0, %s39
      %s42 = sadd.s32 1, %s26
      %s43 = scalar_select %p40, %s42, %s26
      %p44 = scmp.ge.s32.totalorder %s43, 1
      %s45 = scalar_select %p44, 0, %s43
      %s46 = ssub.s32 %s26, %s45
      %p47 = scmp.eq.s32.totalorder %s46, 0
      %s49 = sadd.s32 %s48, 1
      %s50 = scalar_select %p47, %s48, %s49
      %p53 = pneg %p47
      %p54 = scmp.eq.s32.totalorder %s19, 99
      %p55 = por %p53, %p54
      %p56 = scmp.ne.s32.totalorder %s48, %s51
      %p57 = scmp.eq.s32.totalorder %s19, 0
      %p58 = por %p56, %p57
      %p59 = scmp.ne.s32.totalorder %s48, %s51
      %p60 = scmp.eq.s32.totalorder %s24, 99
      %p61 = por %p59, %p60
      %p62 = scmp.ne.s32.totalorder %s51, %s52
      %p63 = scmp.eq.s32.totalorder %s24, 0
      %p64 = por %p62, %p63
      %p65 = scmp.ne.s32.totalorder %s51, %s52
      %p66 = scmp.eq.s32.totalorder %s25, 99
      %p67 = por %p65, %p66
      %p69 = scmp.ne.s32.totalorder %s52, %s68
      %p70 = scmp.eq.s32.totalorder %s25, 0
      %p71 = por %p69, %p70
      %s72 = ssub.s32 %s27, %s41
      %p73 = scmp.eq.s32.totalorder %s72, 0
      %s75 = sadd.s32 %s74, 1
      %s76 = scalar_select %p73, %s74, %s75
      %p79 = pneg %p73
      %p80 = scmp.eq.s32.totalorder %s19, 99
      %p81 = por %p79, %p80
      %p82 = scmp.ne.s32.totalorder %s74, %s77
      %p83 = scmp.eq.s32.totalorder %s19, 0
      %p84 = por %p82, %p83
      %p85 = scmp.ne.s32.totalorder %s74, %s77
      %p86 = scmp.eq.s32.totalorder %s24, 99
      %p87 = por %p85, %p86
      %p88 = scmp.ne.s32.totalorder %s77, %s78
      %p89 = scmp.eq.s32.totalorder %s24, 0
      %p90 = por %p88, %p89
      %p91 = scmp.ne.s32.totalorder %s77, %s78
      %p92 = scmp.eq.s32.totalorder %s25, 99
      %p93 = por %p91, %p92
      %p95 = scmp.ne.s32.totalorder %s78, %s94
      %p96 = scmp.eq.s32.totalorder %s25, 0
      %p97 = por %p95, %p96
      %s99 = sadd.s32 %s98, 1
      %p102 = scmp.eq.s32.totalorder %s19, 99
      %p103 = scmp.ne.s32.totalorder %s98, %s100
      %p104 = scmp.eq.s32.totalorder %s19, 0
      %p105 = por %p103, %p104
      %p106 = scmp.ne.s32.totalorder %s98, %s100
      %p107 = scmp.eq.s32.totalorder %s24, 99
      %p108 = por %p106, %p107
      %p109 = scmp.ne.s32.totalorder %s100, %s101
      %p110 = scmp.eq.s32.totalorder %s24, 0
      %p111 = por %p109, %p110
      %p112 = scmp.ne.s32.totalorder %s100, %s101
      %p113 = scmp.eq.s32.totalorder %s25, 99
      %p114 = por %p112, %p113
      %p116 = scmp.ne.s32.totalorder %s101, %s115
      %p117 = scmp.eq.s32.totalorder %s25, 0
      %p118 = por %p116, %p117
      %s120 = sadd.s32 %s119, 1
      %p123 = scmp.eq.s32.totalorder %s19, 99
      %p124 = scmp.ne.s32.totalorder %s119, %s121
      %p125 = scmp.eq.s32.totalorder %s19, 0
      %p126 = por %p124, %p125
      %p127 = scmp.ne.s32.totalorder %s119, %s121
      %p128 = scmp.eq.s32.totalorder %s24, 99
      %p129 = por %p127, %p128
      %p130 = scmp.ne.s32.totalorder %s121, %s122
      %p131 = scmp.eq.s32.totalorder %s24, 0
      %p132 = por %p130, %p131
      %p133 = scmp.ne.s32.totalorder %s121, %s122
      %p134 = scmp.eq.s32.totalorder %s25, 99
      %p135 = por %p133, %p134
      %p137 = scmp.ne.s32.totalorder %s122, %s136
      %p138 = scmp.eq.s32.totalorder %s25, 0
      %p139 = por %p137, %p138
      %s140 = ssub.s32 %s26, %s45
      %p141 = scmp.eq.s32.totalorder %s140, 0
      %s143 = sadd.s32 %s142, 1
      %s144 = scalar_select %p141, %s142, %s143
      %p147 = pneg %p141
      %p148 = scmp.eq.s32.totalorder %s19, 99
      %p149 = por %p147, %p148
      %p150 = scmp.ne.s32.totalorder %s142, %s145
      %p151 = scmp.eq.s32.totalorder %s19, 0
      %p152 = por %p150, %p151
      %p153 = scmp.ne.s32.totalorder %s142, %s145
      %p154 = scmp.eq.s32.totalorder %s24, 99
      %p155 = por %p153, %p154
      %p156 = scmp.ne.s32.totalorder %s145, %s146
      %p157 = scmp.eq.s32.totalorder %s24, 0
      %p158 = por %p156, %p157
      %p159 = scmp.ne.s32.totalorder %s145, %s146
      %p160 = scmp.eq.s32.totalorder %s25, 99
      %p161 = por %p159, %p160
      %p163 = scmp.ne.s32.totalorder %s146, %s162
      %p164 = scmp.eq.s32.totalorder %s25, 0
      %p165 = por %p163, %p164
      %p166 = scmp.le.s32.totalorder 1, %s19
      %p167 = scmp.lt.s32.totalorder %s19, 101
      %p168 = pnand %p166, %p167
      %p169 = pneg %p168
      // Predicated region
      $region9: #{tpu_custom_call.1} parent=5 // pred_check
        _
      $region10: #{tpu_custom_call.1} parent=5 // pred_check_branch
        %171 = sbr.rel (%p168) target = $region12
      $region11: #{tpu_custom_call.1} parent=5 // pred_region
        %s172 = ssub.s32 %s19, 1
        // Predicated region
        $region13: #{tpu_custom_call.1} parent=11 // pred_check
          %p173 = pneg %p64
        $region14: #{tpu_custom_call.1} parent=11 // pred_check_branch
          %175 = sbr.rel (%p173) target = $region16
        $region15: #{tpu_custom_call.1} parent=11 // pred_region
          %s176 = smul.u32 2, %s29
          %s178 = ssub.s32 256, 256
          %179 = vsyncadd [#allocation6], %s178
          %s180 = smul.addr %s176, 128
          %s181 = scalar_lea.hbm %s1, %s180
          %s182 = sshll.u32 [#allocation5], 4
          %s183 = int_to_ptr.vmem [resolvable:$true] %s182
          %188 = dma.hbm_to_vmem [thread:$0]  %s181, 256, %s183, [#allocation6], 128, 128, 8
        $region16: #{tpu_custom_call.1} parent=11 // pred_fallthru
          _
        // Predicated region
        $region17: #{tpu_custom_call.1} parent=11 // pred_check
          %p189 = pneg %p90
        $region18: #{tpu_custom_call.1} parent=11 // pred_check_branch
          %191 = sbr.rel (%p189) target = $region20
        $region19: #{tpu_custom_call.1} parent=11 // pred_region
          %s193 = ssub.s32 512, 512
          %194 = vsyncadd [#allocation9], %s193
          %s195 = smul.addr %s30, 128
          %s196 = scalar_lea.hbm %s2, %s195
          %s197 = sshll.u32 [#allocation8], 4
          %s198 = int_to_ptr.vmem [resolvable:$true] %s197
          %203 = dma.hbm_to_vmem [thread:$0]  %s196, 512, %s198, [#allocation9], 128, 128, 8
        $region20: #{tpu_custom_call.1} parent=11 // pred_fallthru
          _
        // Predicated region
        $region21: #{tpu_custom_call.1} parent=11 // pred_check
          %p204 = pneg %p111
        $region22: #{tpu_custom_call.1} parent=11 // pred_check_branch
          %206 = sbr.rel (%p204) target = $region24
        $region23: #{tpu_custom_call.1} parent=11 // pred_region
          %s208 = ssub.s32 32, 32
          %209 = vsyncadd [#allocation9], %s208
          %s211 = sshll.u32 [#allocation10], 4
          %s212 = int_to_ptr.vmem [resolvable:$true] %s211
          %214 = dma.hbm_to_vmem [thread:$0]  %s3, 32, %s212, [#allocation9]
        $region24: #{tpu_custom_call.1} parent=11 // pred_fallthru
          _
        // Predicated region
        $region25: #{tpu_custom_call.1} parent=11 // pred_check
          %p215 = pneg %p132
        $region26: #{tpu_custom_call.1} parent=11 // pred_check_branch
          %217 = sbr.rel (%p215) target = $region28
        $region27: #{tpu_custom_call.1} parent=11 // pred_region
          %s219 = ssub.s32 512, 512
          %220 = vsyncadd [#allocation12], %s219
          %s221 = sshll.u32 [#allocation11], 4
          %s222 = int_to_ptr.vmem [resolvable:$true] %s221
          %227 = dma.hbm_to_vmem [thread:$0]  %s4, 512, %s222, [#allocation12], 128, 128, 8
        $region28: #{tpu_custom_call.1} parent=11 // pred_fallthru
          _
      $region12: #{tpu_custom_call.1} parent=5 // pred_fallthru
        _
      %p228 = scmp.lt.s32.totalorder %s19, 100
      // Predicated region
      $region29: #{tpu_custom_call.1} parent=5 // pred_check
        %p229 = pneg %p228
      $region30: #{tpu_custom_call.1} parent=5 // pred_check_branch
        %231 = sbr.rel (%p229) target = $region32
      $region31: #{tpu_custom_call.1} parent=5 // pred_region
        _
      $region32: #{tpu_custom_call.1} parent=5 // pred_fallthru
        _
      %p232 = scmp.le.s32.totalorder 1, %s19
      %p233 = scmp.lt.s32.totalorder %s19, 101
      %p234 = pnand %p232, %p233
      %p235 = pneg %p234
      // Predicated region
      $region33: #{tpu_custom_call.1} parent=5 // pred_check
        _
      $region34: #{tpu_custom_call.1} parent=5 // pred_check_branch
        %237 = sbr.rel (%p234) target = $region36
      $region35: #{tpu_custom_call.1} parent=5 // pred_region
        %s238 = ssub.s32 %s19, 1
        // Predicated region
        $region37: #{tpu_custom_call.1} parent=35 // pred_check
          %p239 = pneg %p64
        $region38: #{tpu_custom_call.1} parent=35 // pred_check_branch
          %241 = sbr.rel (%p239) target = $region40
        $region39: #{tpu_custom_call.1} parent=35 // pred_region
          %242 = dma.done [#allocation6], 256
        $region40: #{tpu_custom_call.1} parent=35 // pred_fallthru
          _
        // Predicated region
        $region41: #{tpu_custom_call.1} parent=35 // pred_check
          %p243 = pneg %p90
        $region42: #{tpu_custom_call.1} parent=35 // pred_check_branch
          %245 = sbr.rel (%p243) target = $region44
        $region43: #{tpu_custom_call.1} parent=35 // pred_region
          %246 = dma.done [#allocation9], 512
        $region44: #{tpu_custom_call.1} parent=35 // pred_fallthru
          _
        // Predicated region
        $region45: #{tpu_custom_call.1} parent=35 // pred_check
          %p247 = pneg %p111
        $region46: #{tpu_custom_call.1} parent=35 // pred_check_branch
          %249 = sbr.rel (%p247) target = $region48
        $region47: #{tpu_custom_call.1} parent=35 // pred_region
          %250 = dma.done [#allocation9], 32
        $region48: #{tpu_custom_call.1} parent=35 // pred_fallthru
          _
        // Predicated region
        $region49: #{tpu_custom_call.1} parent=35 // pred_check
          %p251 = pneg %p132
        $region50: #{tpu_custom_call.1} parent=35 // pred_check_branch
          %253 = sbr.rel (%p251) target = $region52
        $region51: #{tpu_custom_call.1} parent=35 // pred_region
          %254 = dma.done [#allocation12], 512
        $region52: #{tpu_custom_call.1} parent=35 // pred_fallthru
          _
        %p255 = pneg %p64
        %p256 = pneg %p61
        %p257 = pneg %p90
        %p258 = pneg %p87
        %p259 = pneg %p111
        %p260 = pneg %p108
        %p261 = pneg %p132
        %p262 = pneg %p129
        %p263 = pneg %p158
        %p264 = pneg %p155
        %s265 = smul.u32 2, %s29
        %p267 = scmp.eq.s32.totalorder %s30, 0
        %p268 = scmp.eq.s32.totalorder %s31, 0
        %p269 = pnand %p267, %p268
        %p270 = pneg %p269
        // Predicated region
        $region53: #{tpu_custom_call.1} parent=35 // pred_check
          _
        $region54: #{tpu_custom_call.1} parent=35 // pred_check_branch
          %272 = sbr.rel (%p269) target = $region56
        $region55: #{tpu_custom_call.1} parent=35 // pred_region
          %273 = vst [vmem:[#allocation13] sm:$0xff] 0.0
        $region56: #{tpu_custom_call.1} parent=35 // pred_fallthru
          _
        // Predicated region
        $region57: #{tpu_custom_call.1} parent=35 // pred_check
          %p274 = pneg %p268
        $region58: #{tpu_custom_call.1} parent=35 // pred_check_branch
          %276 = sbr.rel (%p274) target = $region60
        $region59: #{tpu_custom_call.1} parent=35 // pred_region
          %v277 = vld [vmem:[#allocation5] sm:$0xff]
          %v278 = vld [vmem:[#allocation5 + $0x8] sm:$0xff]
          %v279 = vld [vmem:[#allocation8] sm:$0xff]
          %v280 = vld [vmem:[#allocation8 + $0x8] sm:$0xff]
          %v281 = vld [vmem:[#allocation8 + $0x10] sm:$0xff]
          %v282 = vld [vmem:[#allocation8 + $0x18] sm:$0xff]
          %vm283 = vcmask 261120
          %v285 = vsel %vm283, %v277, 0
          %v288 = vsel %vm283, %v278, 0
          %290 = vmatprep.subr.mxu0 0.0
          %291 = vmatpush1.msra.mxu0 %v279
          %292 = vmatprep.subr.mxu0 0.0
          %293 = vmatpush1.msra.mxu0 %v280
          %294 = vmatprep.subr.mxu0 0.0
          %295 = vmatpush1.msra.mxu0 %v281
          %296 = vmatprep.subr.mxu0 0.0
          %297 = vmatpush1.msra.mxu0 %v282
          %298 = vmatprep.subr.mxu0 0.0
          %299 = vmatpush1.msra.mxu0 0.0
          %300 = vmatprep.subr.mxu0 0.0
          %301 = vmatpush1.msra.mxu0 0.0
          %302 = vmatprep.subr.mxu0 0.0
          %303 = vmatpush1.msra.mxu0 0.0
          %304 = vmatprep.subr.mxu0 0.0
          %305 = vmatpush1.msra.mxu0 0.0
          %306 = vmatprep.subr.mxu0 0.0
          %307 = vmatpush1.msra.mxu0 0.0
          %308 = vmatprep.subr.mxu0 0.0
          %309 = vmatpush1.msra.mxu0 0.0
          %310 = vmatprep.subr.mxu0 0.0
          %311 = vmatpush1.msra.mxu0 0.0
          %312 = vmatprep.subr.mxu0 0.0
          %313 = vmatpush1.msra.mxu0 0.0
          %314 = vmatprep.subr.mxu0 0.0
          %315 = vmatpush1.msra.mxu0 0.0
          %316 = vmatprep.subr.mxu0 0.0
          %317 = vmatpush1.msra.mxu0 0.0
          %318 = vmatprep.subr.mxu0 0.0
          %319 = vmatpush1.msra.mxu0 0.0
          %320 = vmatprep.subr.mxu0 0.0
          %321 = vmatpush1.msra.mxu0 0.0
          %322 = vmatprep.subr.mxu0 0.0
          %323 = vmatpush1.msra.mxu0 0.0
          %324 = vmatprep.subr.mxu0 0.0
          %325 = vmatpush1.msra.mxu0 0.0
          %326 = vmatprep.subr.mxu0 0.0
          %327 = vmatpush1.msra.mxu0 0.0
          %328 = vmatprep.subr.mxu0 0.0
          %329 = vmatpush1.msra.mxu0 0.0
          %330 = vmatprep.subr.mxu0 0.0
          %331 = vmatpush1.msra.mxu0 0.0
          %332 = vmatprep.subr.mxu0 0.0
          %333 = vmatpush1.msra.mxu0 0.0
          %334 = vmatprep.subr.mxu0 0.0
          %335 = vmatpush1.msra.mxu0 0.0
          %336 = vmatprep.subr.mxu0 0.0
          %337 = vmatpush1.msra.mxu0 0.0
          %338 = vmatprep.subr.mxu0 0.0
          %339 = vmatpush1.msra.mxu0 0.0
          %340 = vmatprep.subr.mxu0 0.0
          %341 = vmatpush1.msra.mxu0 0.0
          %342 = vmatprep.subr.mxu0 0.0
          %343 = vmatpush1.msra.mxu0 0.0
          %344 = vmatprep.subr.mxu0 0.0
          %345 = vmatpush1.msra.mxu0 0.0
          %346 = vmatprep.subr.mxu0 0.0
          %347 = vmatpush1.msra.mxu0 0.0
          %348 = vmatprep.subr.mxu0 0.0
          %349 = vmatpush1.msra.mxu0 0.0
          %350 = vmatprep.subr.mxu0 0.0
          %351 = vmatpush1.msra.mxu0 0.0
          %352 = vmatprep.subr.mxu0 0.0
          %353 = vmatpush1.msra.mxu0 0.0
          %354 = vmatprep.mubr.f32.mxu0 0.0
          %355 = vmatmul.mubr.f32.gmra.mrb[0].mxu0 %v285
          %v356 = vpop.f32.mrb[0].mxu0
          %v357 = vadd.f32 0.0, %v356
          %v358 = vpop.f32.mrb[0].mxu0
          %359 = vmatprep.mubr.f32.mxu0 0.0
          %360 = vmatmul.mubr.f32.gmra.mrb[0].mxu0 %v288
          %v361 = vpop.f32.mrb[0].mxu0
          %v362 = vadd.f32 0.0, %v361
          %v363 = vpop.f32.mrb[0].mxu0
          %364 = vdwg.mxu0
          %365 = vst.msk [vmem:[#allocation2] sm:$0xff] %vm283, %v357
          %366 = vst.msk [vmem:[#allocation2 + $0x8] sm:$0xff] %vm283, %v362
        $region60: #{tpu_custom_call.1} parent=35 // pred_fallthru
          _
        %s367 = sld [smem:[#allocation4 + %s31]]
        %s368 = sshra.s32 %s31, 7
        %s369 = sand.u32 %s31, 127
        %s370 = sadd.s32 %s368, 1
        %s371 = smul.u32 %s370, 128
        %s372 = sshra.s32 %s31, 7
        %s373 = sand.u32 %s31, 127
        %s374 = sadd.s32 %s371, %s373
        %s375 = sld [smem:[#allocation4 + %s374]]
        %s376 = sadd.s32 %s368, 2
        %s377 = smul.u32 %s376, 128
        %s378 = sadd.s32 %s377, %s373
        %s379 = sld [smem:[#allocation4 + %s378]]
        %s380 = sadd.s32 %s368, 3
        %s381 = smul.u32 %s380, 128
        %s382 = sadd.s32 %s381, %s373
        %s383 = sld [smem:[#allocation4 + %s382]]
        %s384 = sadd.s32 %s368, 4
        %s385 = smul.u32 %s384, 128
        %s386 = sadd.s32 %s385, %s373
        %s387 = sld [smem:[#allocation4 + %s386]]
        %s388 = sadd.s32 %s368, 5
        %s389 = smul.u32 %s388, 128
        %s390 = sadd.s32 %s389, %s373
        %s391 = sld [smem:[#allocation4 + %s390]]
        %s392 = sadd.s32 %s368, 6
        %s393 = smul.u32 %s392, 128
        %s394 = sadd.s32 %s393, %s373
        %s395 = sld [smem:[#allocation4 + %s394]]
        %s396 = sadd.s32 %s368, 7
        %s397 = smul.u32 %s396, 128
        %s398 = sadd.s32 %s397, %s373
        %s399 = sld [smem:[#allocation4 + %s398]]
        %s400 = sadd.s32 %s368, 8
        %s401 = smul.u32 %s400, 128
        %s402 = sadd.s32 %s401, %s373
        %s403 = sld [smem:[#allocation4 + %s402]]
        %v404 = vld [vmem:[#allocation10] sm:$0x1]
        %v405 = vld [vmem:[#allocation10 + $0x1] sm:$0x1]
        %v406 = vstv %s367
        %vm407 = vcmp.gt.f32.partialorder %v404, %v406
        %v408 = vstv %s375
        %v409 = vmul.f32 %v404, %v408
        %v410 = vsel %vm407, %v409, 1.0
        %s411 = ssub.f32 0.0, %s367
        %v412 = vstv %s411
        %vm413 = vcmp.lt.f32.partialorder %v405, %v412
        %s414 = ssub.f32 0.0, %s375
        %v415 = vstv %s414
        %v416 = vmul.f32 %v405, %v415
        %v417 = vsel %vm413, %v416, 1.0
        %v418 = vmax.f32 %v410, %v417
        %v419 = vstv %s379
        %v420 = vmul.f32 %v418, %v419
        %v421 = vrcp.pop %v420
        %v422 = vld [vmem:[#allocation11] sm:$0xff]
        %v423 = vld [vmem:[#allocation11 + $0x8] sm:$0xff]
        %v424 = vld [vmem:[#allocation11 + $0x10] sm:$0xff]
        %v425 = vld [vmem:[#allocation11 + $0x18] sm:$0xff]
        %vm426 = vcmp.gt.f32.partialorder %v422, %v406
        %vm427 = vcmp.gt.f32.partialorder %v423, %v406
        %vm428 = vcmp.gt.f32.partialorder %v424, %v406
        %vm429 = vcmp.gt.f32.partialorder %v425, %v406
        %v430 = vmul.f32 %v422, %v408
        %v431 = vmul.f32 %v423, %v408
        %v432 = vmul.f32 %v424, %v408
        %v433 = vmul.f32 %v425, %v408
        %v434 = vsel %vm426, %v430, 1.0
        %v435 = vsel %vm427, %v431, 1.0
        %v436 = vsel %vm428, %v432, 1.0
        %v437 = vsel %vm429, %v433, 1.0
        %vm438 = vcmp.lt.f32.partialorder %v422, %v412
        %vm439 = vcmp.lt.f32.partialorder %v423, %v412
        %vm440 = vcmp.lt.f32.partialorder %v424, %v412
        %vm441 = vcmp.lt.f32.partialorder %v425, %v412
        %v442 = vmul.f32 %v422, %v415
        %v443 = vmul.f32 %v423, %v415
        %v444 = vmul.f32 %v424, %v415
        %v445 = vmul.f32 %v425, %v415
        %v446 = vsel %vm438, %v442, 1.0
        %v447 = vsel %vm439, %v443, 1.0
        %v448 = vsel %vm440, %v444, 1.0
        %v449 = vsel %vm441, %v445, 1.0
        %454 = vrot.lane.b32.xlu0 %v446, 127
        %v455 = vpop.permute.xlu0 %454
        %456 = vrot.lane.b32.xlu0 %v447, 127
        %v457 = vpop.permute.xlu0 %456
        %458 = vrot.lane.b32.xlu0 %v448, 127
        %v459 = vpop.permute.xlu0 %458
        %460 = vrot.lane.b32.xlu0 %v449, 127
        %v461 = vpop.permute.xlu0 %460
        %v466 = vmax.f32 %v434, %v455
        %v467 = vmax.f32 %v435, %v457
        %v468 = vmax.f32 %v436, %v459
        %v469 = vmax.f32 %v437, %v461
        %v470 = vstv %s391
        %v471 = vmul.f32 %v466, %v470
        %v472 = vmul.f32 %v467, %v470
        %v473 = vmul.f32 %v468, %v470
        %v474 = vmul.f32 %v469, %v470
        %v475 = vld [vmem:[#allocation5] sm:$0xff]
        %v476 = vld [vmem:[#allocation5 + $0x8] sm:$0xff]
        %v477 = vlaneseq
        %v478 = vshrl.u32 %v477, 7
        %v479 = vsub.s32 0, %v478
        %v480 = vrot.slane %v421, %v479
        %v481 = vmul.f32 %v475, %v480
        %v482 = vmul.f32 %v476, %v480
        %v483 = vround.ne.pseudo %v481
        %v484 = vround.ne.pseudo %v482
        %v485 = vstv %s383
        %v486 = vmax.f32 %v485, %v483
        %v487 = vmax.f32 %v485, %v484
        %v488 = vstv %s387
        %v489 = vmin.f32 %v488, %v486
        %v490 = vmin.f32 %v488, %v487
        %v491 = vld [vmem:[#allocation8] sm:$0xff]
        %v492 = vld [vmem:[#allocation8 + $0x8] sm:$0xff]
        %v493 = vld [vmem:[#allocation8 + $0x10] sm:$0xff]
        %v494 = vld [vmem:[#allocation8 + $0x18] sm:$0xff]
        %496 = vset.pattern.permute.xlu0 0
        %497 = vperm.xlu0 %496, %v471
        %v498 = vpop.permute.xlu0 %497
        %501 = vset.pattern.permute.xlu0 0
        %502 = vperm.xlu0 %501, %v472
        %v503 = vpop.permute.xlu0 %502
        %506 = vset.pattern.permute.xlu0 0
        %507 = vperm.xlu0 %506, %v473
        %v508 = vpop.permute.xlu0 %507
        %511 = vset.pattern.permute.xlu0 0
        %512 = vperm.xlu0 %511, %v474
        %v513 = vpop.permute.xlu0 %512
        %v515 = vmul.f32 %v491, %v498
        %v516 = vmul.f32 %v492, %v503
        %v517 = vmul.f32 %v493, %v508
        %v518 = vmul.f32 %v494, %v513
        %v519 = vround.ne.pseudo %v515
        %v520 = vround.ne.pseudo %v516
        %v521 = vround.ne.pseudo %v517
        %v522 = vround.ne.pseudo %v518
        %v523 = vstv %s395
        %v524 = vmax.f32 %v523, %v519
        %v525 = vmax.f32 %v523, %v520
        %v526 = vmax.f32 %v523, %v521
        %v527 = vmax.f32 %v523, %v522
        %v528 = vstv %s399
        %v529 = vmin.f32 %v528, %v524
        %v530 = vmin.f32 %v528, %v525
        %v531 = vmin.f32 %v528, %v526
        %v532 = vmin.f32 %v528, %v527
        %v533 = vpack.c.bf16 %v490, %v489
        %v534 = vpack.c.bf16 %v530, %v529
        %v535 = vpack.c.bf16 %v532, %v531
        %vm536 = vcmask 261120
        %v538 = vsel %vm536, %v533, 0
        %540 = vmatprep.subr.bf16.mxu0 0
        %541 = vmatpush1.bf16.msra.mxu0 %v534
        %542 = vmatprep.subr.bf16.mxu0 0
        %543 = vmatpush1.bf16.msra.mxu0 %v535
        %544 = vmatprep.subr.bf16.mxu0 0
        %545 = vmatpush1.bf16.msra.mxu0 0
        %546 = vmatprep.subr.bf16.mxu0 0
        %547 = vmatpush1.bf16.msra.mxu0 0
        %548 = vmatprep.subr.bf16.mxu0 0
        %549 = vmatpush1.bf16.msra.mxu0 0
        %550 = vmatprep.subr.bf16.mxu0 0
        %551 = vmatpush1.bf16.msra.mxu0 0
        %552 = vmatprep.subr.bf16.mxu0 0
        %553 = vmatpush1.bf16.msra.mxu0 0
        %554 = vmatprep.subr.bf16.mxu0 0
        %555 = vmatpush1.bf16.msra.mxu0 0
        %556 = vmatprep.subr.bf16.mxu0 0
        %557 = vmatpush1.bf16.msra.mxu0 0
        %558 = vmatprep.subr.bf16.mxu0 0
        %559 = vmatpush1.bf16.msra.mxu0 0
        %560 = vmatprep.subr.bf16.mxu0 0
        %561 = vmatpush1.bf16.msra.mxu0 0
        %562 = vmatprep.subr.bf16.mxu0 0
        %563 = vmatpush1.bf16.msra.mxu0 0
        %564 = vmatprep.subr.bf16.mxu0 0
        %565 = vmatpush1.bf16.msra.mxu0 0
        %566 = vmatprep.subr.bf16.mxu0 0
        %567 = vmatpush1.bf16.msra.mxu0 0
        %568 = vmatprep.subr.bf16.mxu0 0
        %569 = vmatpush1.bf16.msra.mxu0 0
        %570 = vmatprep.subr.bf16.mxu0 0
        %571 = vmatpush1.bf16.msra.mxu0 0
        %572 = vmatprep.mubr.bf16.mxu0 0
        %573 = vmatmul.mubr.bf16.gmra.mrb[0].mxu0 %v538
        %v574 = vpop.f32.mrb[0].mxu0
        %v575 = vadd.f32 0.0, %v574
        %v576 = vpop.f32.mrb[0].mxu0
        %v577 = vpop.f32.mrb[0].mxu0
        %v578 = vadd.f32 0.0, %v577
        %v579 = vpop.f32.mrb[0].mxu0
        %580 = vdwg.mxu0
        %v581 = vstv %s403
        %v582 = vmul.f32 %v575, %v581
        %v583 = vmul.f32 %v578, %v581
        %v584 = vld [vmem:[#allocation2] sm:$0xff]
        %v585 = vld [vmem:[#allocation2 + $0x8] sm:$0xff]
        %v586 = vsub.f32 %v582, %v584
        %v587 = vsub.f32 %v583, %v585
        %v588 = vmul.f32 %v586, %v586
        %v589 = vmul.f32 %v587, %v587
        %v590 = vsel %vm536, %v588, 0.0
        %v591 = vsel %vm536, %v589, 0.0
        %v592 = vadd.f32 %v590, %v591
        %593 = vadd.xlane.f32.xlu0 %v592
        %v594 = vpop.xlane.xlu0 %593
        %v595 = vrot.slane %v594, 4
        %v596 = vadd.f32 %v594, %v595
        %v597 = vrot.slane %v596, 2
        %v598 = vadd.f32 %v596, %v597
        %v599 = vrot.slane %v598, 1
        %v600 = vadd.f32 %v598, %v599
        %s601 = vtos %v600
        %s602 = smul.f32 %s601, 0.0625
        %v603 = vlaneseq
        %v604 = vand.u32 %v603, 127
        %v605 = vld [vmem:[#allocation13] sm:$0xff]
        %v606 = vstv %s31
        %vm607 = vcmp.eq.s32.totalorder %v604, %v606
        %v608 = vstv %s602
        %v609 = vsel %vm607, %v608, 0.0
        %v610 = vadd.f32 %v605, %v609
        %611 = vst [vmem:[#allocation13] sm:$0xff] %v610
        // Predicated region
        $region61: #{tpu_custom_call.1} parent=35 // pred_check
          %p612 = pneg %p155
        $region62: #{tpu_custom_call.1} parent=35 // pred_check_branch
          %614 = sbr.rel (%p612) target = $region64
        $region63: #{tpu_custom_call.1} parent=35 // pred_region
          %s616 = ssub.s32 128, 128
          %617 = vsyncadd [#allocation7], %s616
          %s618 = smul.addr %s29, 128
          %s619 = scalar_lea.hbm %s5, %s618
          %s621 = sshll.u32 [#allocation13], 4
          %s622 = int_to_ptr.vmem [resolvable:$true] %s621
          %624 = dma.vmem_to_hbm [thread:$0]  %s622, 128, %s619, [#allocation7]
        $region64: #{tpu_custom_call.1} parent=35 // pred_fallthru
          _
        // Predicated region
        $region65: #{tpu_custom_call.1} parent=35 // pred_check
          %p625 = pneg %p155
        $region66: #{tpu_custom_call.1} parent=35 // pred_check_branch
          %627 = sbr.rel (%p625) target = $region68
        $region67: #{tpu_custom_call.1} parent=35 // pred_region
          %628 = dma.done [#allocation7], 128
        $region68: #{tpu_custom_call.1} parent=35 // pred_fallthru
          _
      $region36: #{tpu_custom_call.1} parent=5 // pred_fallthru
        _
      %p629 = scmp.le.s32.totalorder 2, %s19
      // Predicated region
      $region69: #{tpu_custom_call.1} parent=5 // pred_check
        %p630 = pneg %p629
      $region70: #{tpu_custom_call.1} parent=5 // pred_check_branch
        %632 = sbr.rel (%p630) target = $region72
      $region71: #{tpu_custom_call.1} parent=5 // pred_region
        %s633 = ssub.s32 %s19, 2
      $region72: #{tpu_custom_call.1} parent=5 // pred_fallthru
        _
    $region6: #{tpu_custom_call.1} parent=1 // loop_footer
      %s23 = sadd.s32 1, %s19
    $region7: #{tpu_custom_call.1} parent=1 // loop_footer_branch
      %18 = sbr.rel target = $region3
    $region8: #{tpu_custom_call.1} parent=1 // loop_exit
      _
    %634 = vsyncpa [#allocation6], 1
    %s635 = scalar_lea.sflag [#allocation6], 1
    %636 = vsyncpa %s635, 1
    %637 = vsyncpa [#allocation9], 1
    %638 = vsyncpa [#allocation12], 1
    %639 = vsyncpa [#allocation7], 1
    %s640 = scalar_lea.sflag [#allocation7], 1
    %641 = vsyncpa %s640, 1

// kernel: tpu_custom_call.1
$region0: #{tpu_custom_call.1}
  #allocation0 [shape = 'u32[]', space=smem, size = 0x4, offset = 0x4, fixed_abs, tag = 'smem constant byte address 0x4 - core index']
  #allocation1 [shape = 'u32[144,128]{1,0:T(1,128)}', space=vmem, size = 0x12000, scoped, tag = 'internal scratch']
  #allocation2 [shape = 'f32[16,32]{1,0:T(8,128)}', space=vmem, size = 0x2000, scoped, tag = 'scratch operand']
  #allocation3 [shape = 's32[1]{0}', space=sflag, size = 0x4, scoped, tag = 'scoped memory for tpu_custom_call.1']
  #allocation4 [shape = 'u8[8192]{0}', space=smem, size = 0x2000, scoped, tag = 'prefetched SMEM operand 0']
  %s0 = inlined_call_operand.hbm [shape: f32[9,100], index: 0, kind: input, shape index: {}]
  %s1 = inlined_call_operand.hbm [shape: f32[16,32], index: 1, kind: input, shape index: {}]
  %s2 = inlined_call_operand.hbm [shape: f32[32,32], index: 2, kind: input, shape index: {}]
  %s3 = inlined_call_operand.hbm [shape: f32[2,32], index: 3, kind: input, shape index: {}]
  %s4 = inlined_call_operand.hbm [shape: f32[32,2], index: 4, kind: input, shape index: {}]
  %s5 = inlined_call_operand.hbm [shape: f32[1,8,128], index: 5, kind: output, shape index: {}]
  %s6 = sld [smem:[#allocation0]]
  $region73: #{tpu_custom_call.1} parent=0
    _
  %s8 = ssub.s32 1, %s6
  %s9 = scalar_select 0, %s8, %s6
  %11 = dma.hbm_to_smem %s0, 256, [#allocation4], [#allocation3]
  %12 = dma.done [#allocation3], 256
  %13 = sfence
  $region1: #{tpu_custom_call.1} parent=0
    #allocation5 [shape = 'u8[8192]{0}', space=vmem, size = 0x2000, scoped, tag = 'input window, operand 1, single buffered']
    #allocation6 [shape = 's32[2]{0}', space=sflag, size = 0x8, scoped, tag = 'scoped memory for tpu_custom_call.1']
    #allocation7 [shape = 's32[2]{0}', space=sflag, size = 0x8, scoped, tag = 'scoped memory for tpu_custom_call.1']
    #allocation8 [shape = 'u8[16384]{0}', space=vmem, size = 0x4000, scoped, tag = 'input window, operand 2, single buffered']
    #allocation9 [shape = 's32[1]{0}', space=sflag, size = 0x4, scoped, tag = 'scoped memory for tpu_custom_call.1']
    #allocation10 [shape = 'u8[1024]{0}', space=vmem, size = 0x400, scoped, tag = 'input window, operand 3, single buffered']
    #allocation11 [shape = 'u8[16384]{0}', space=vmem, size = 0x4000, scoped, tag = 'input window, operand 4, single buffered']
    #allocation12 [shape = 's32[1]{0}', space=sflag, size = 0x4, scoped, tag = 'scoped memory for tpu_custom_call.1']
    #allocation13 [shape = 'u8[4096]{0}', space=vmem, size = 0x1000, scoped, tag = 'output window, operand 0, single buffered']
    %14 = vsyncpa [#allocation6], 0
    %15 = vsyncpa [#allocation9], 0
    %16 = vsyncpa [#allocation12], 0
    %17 = vsyncpa [#allocation7], 0
    loop: start=0, step=1, limit=102
    $region2: #{tpu_custom_call.1} parent=1 // loop_pre_header
      _
    $region3: #{tpu_custom_call.1} parent=1 // loop_header
      %s19 = sphi 0, %s23
      %p20 = scmp.ge.s32.totalorder %s19, 102
      %s26 = sphi 0, %s45
      %s27 = sphi 0, %s41
      %s28 = sphi 0, %s37
      %s29 = sphi 0, %s26
      %s30 = sphi 0, %s27
      %s31 = sphi 0, %s28
      %s32 = sphi 0, %s29
      %s33 = sphi 0, %s30
      %s34 = sphi 0, %s31
      %s48 = sphi 0, %s50
      %s51 = sphi 0, %s48
      %s52 = sphi 0, %s51
      %s68 = sphi 0, %s52
      %s74 = sphi 0, %s76
      %s77 = sphi 0, %s74
      %s78 = sphi 0, %s77
      %s94 = sphi 0, %s78
      %s98 = sphi 0, %s98
      %s100 = sphi 0, %s98
      %s101 = sphi 0, %s100
      %s115 = sphi 0, %s101
      %s119 = sphi 0, %s119
      %s121 = sphi 0, %s119
      %s122 = sphi 0, %s121
      %s136 = sphi 0, %s122
      %s142 = sphi 0, %s144
      %s145 = sphi 0, %s142
      %s146 = sphi 0, %s145
      %s162 = sphi 0, %s146
    $region4: #{tpu_custom_call.1} parent=1 // loop_header_branch
      %22 = sbr.rel (%p20) target = $region8
    $region5: #{tpu_custom_call.1} parent=1 // loop_body
      %s24 = ssub.s32 %s19, 1
      %s25 = ssub.s32 %s19, 2
      %s35 = sadd.s32 1, %s28
      %p36 = scmp.ge.s32.totalorder %s35, 100
      %s37 = scalar_select %p36, 0, %s35
      %s38 = sadd.s32 1, %s27
      %s39 = scalar_select %p36, %s38, %s27
      %p40 = scmp.ge.s32.totalorder %s39, 1
      %s41 = scalar_select %p40, 0, %s39
      %s42 = sadd.s32 1, %s26
      %s43 = scalar_select %p40, %s42, %s26
      %p44 = scmp.ge.s32.totalorder %s43, 1
      %s45 = scalar_select %p44, 0, %s43
      %s46 = ssub.s32 %s26, %s45
      %p47 = scmp.eq.s32.totalorder %s46, 0
      %s49 = sadd.s32 %s48, 1
      %s50 = scalar_select %p47, %s48, %s49
      %p53 = pneg %p47
      %p54 = scmp.eq.s32.totalorder %s19, 99
      %p55 = por %p53, %p54
      %p56 = scmp.ne.s32.totalorder %s48, %s51
      %p57 = scmp.eq.s32.totalorder %s19, 0
      %p58 = por %p56, %p57
      %p59 = scmp.ne.s32.totalorder %s48, %s51
      %p60 = scmp.eq.s32.totalorder %s24, 99
      %p61 = por %p59, %p60
      %p62 = scmp.ne.s32.totalorder %s51, %s52
      %p63 = scmp.eq.s32.totalorder %s24, 0
      %p64 = por %p62, %p63
      %p65 = scmp.ne.s32.totalorder %s51, %s52
      %p66 = scmp.eq.s32.totalorder %s25, 99
      %p67 = por %p65, %p66
      %p69 = scmp.ne.s32.totalorder %s52, %s68
      %p70 = scmp.eq.s32.totalorder %s25, 0
      %p71 = por %p69, %p70
      %s72 = ssub.s32 %s27, %s41
      %p73 = scmp.eq.s32.totalorder %s72, 0
      %s75 = sadd.s32 %s74, 1
      %s76 = scalar_select %p73, %s74, %s75
      %p79 = pneg %p73
      %p80 = scmp.eq.s32.totalorder %s19, 99
      %p81 = por %p79, %p80
      %p82 = scmp.ne.s32.totalorder %s74, %s77
      %p83 = scmp.eq.s32.totalorder %s19, 0
      %p84 = por %p82, %p83
      %p85 = scmp.ne.s32.totalorder %s74, %s77
      %p86 = scmp.eq.s32.totalorder %s24, 99
      %p87 = por %p85, %p86
      %p88 = scmp.ne.s32.totalorder %s77, %s78
      %p89 = scmp.eq.s32.totalorder %s24, 0
      %p90 = por %p88, %p89
      %p91 = scmp.ne.s32.totalorder %s77, %s78
      %p92 = scmp.eq.s32.totalorder %s25, 99
      %p93 = por %p91, %p92
      %p95 = scmp.ne.s32.totalorder %s78, %s94
      %p96 = scmp.eq.s32.totalorder %s25, 0
      %p97 = por %p95, %p96
      %s99 = sadd.s32 %s98, 1
      %p102 = scmp.eq.s32.totalorder %s19, 99
      %p103 = scmp.ne.s32.totalorder %s98, %s100
      %p104 = scmp.eq.s32.totalorder %s19, 0
      %p105 = por %p103, %p104
      %p106 = scmp.ne.s32.totalorder %s98, %s100
      %p107 = scmp.eq.s32.totalorder %s24, 99
      %p108 = por %p106, %p107
      %p109 = scmp.ne.s32.totalorder %s100, %s101
      %p110 = scmp.eq.s32.totalorder %s24, 0
      %p111 = por %p109, %p110
      %p112 = scmp.ne.s32.totalorder %s100, %s101
      %p113 = scmp.eq.s32.totalorder %s25, 99
      %p114 = por %p112, %p113
      %p116 = scmp.ne.s32.totalorder %s101, %s115
      %p117 = scmp.eq.s32.totalorder %s25, 0
      %p118 = por %p116, %p117
      %s120 = sadd.s32 %s119, 1
      %p123 = scmp.eq.s32.totalorder %s19, 99
      %p124 = scmp.ne.s32.totalorder %s119, %s121
      %p125 = scmp.eq.s32.totalorder %s19, 0
      %p126 = por %p124, %p125
      %p127 = scmp.ne.s32.totalorder %s119, %s121
      %p128 = scmp.eq.s32.totalorder %s24, 99
      %p129 = por %p127, %p128
      %p130 = scmp.ne.s32.totalorder %s121, %s122
      %p131 = scmp.eq.s32.totalorder %s24, 0
      %p132 = por %p130, %p131
      %p133 = scmp.ne.s32.totalorder %s121, %s122
      %p134 = scmp.eq.s32.totalorder %s25, 99
      %p135 = por %p133, %p134
      %p137 = scmp.ne.s32.totalorder %s122, %s136
      %p138 = scmp.eq.s32.totalorder %s25, 0
      %p139 = por %p137, %p138
      %s140 = ssub.s32 %s26, %s45
      %p141 = scmp.eq.s32.totalorder %s140, 0
      %s143 = sadd.s32 %s142, 1
      %s144 = scalar_select %p141, %s142, %s143
      %p147 = pneg %p141
      %p148 = scmp.eq.s32.totalorder %s19, 99
      %p149 = por %p147, %p148
      %p150 = scmp.ne.s32.totalorder %s142, %s145
      %p151 = scmp.eq.s32.totalorder %s19, 0
      %p152 = por %p150, %p151
      %p153 = scmp.ne.s32.totalorder %s142, %s145
      %p154 = scmp.eq.s32.totalorder %s24, 99
      %p155 = por %p153, %p154
      %p156 = scmp.ne.s32.totalorder %s145, %s146
      %p157 = scmp.eq.s32.totalorder %s24, 0
      %p158 = por %p156, %p157
      %p159 = scmp.ne.s32.totalorder %s145, %s146
      %p160 = scmp.eq.s32.totalorder %s25, 99
      %p161 = por %p159, %p160
      %p163 = scmp.ne.s32.totalorder %s146, %s162
      %p164 = scmp.eq.s32.totalorder %s25, 0
      %p165 = por %p163, %p164
      %p166 = scmp.le.s32.totalorder 1, %s19
      %p167 = scmp.lt.s32.totalorder %s19, 101
      %p168 = pnand %p166, %p167
      %p169 = pneg %p168
      // Predicated region
      $region9: #{tpu_custom_call.1} parent=5 // pred_check
        _
      $region10: #{tpu_custom_call.1} parent=5 // pred_check_branch
        %171 = sbr.rel (%p168) target = $region12
      $region11: #{tpu_custom_call.1} parent=5 // pred_region
        %s172 = ssub.s32 %s19, 1
        // Predicated region
        $region13: #{tpu_custom_call.1} parent=11 // pred_check
          %p173 = pneg %p64
        $region14: #{tpu_custom_call.1} parent=11 // pred_check_branch
          %175 = sbr.rel (%p173) target = $region16
        $region15: #{tpu_custom_call.1} parent=11 // pred_region
          %s176 = smul.u32 2, %s29
          %s178 = ssub.s32 256, 256
          %179 = vsyncadd [#allocation6], %s178
          %s180 = smul.addr %s176, 128
          %s181 = scalar_lea.hbm %s1, %s180
          %s182 = sshll.u32 [#allocation5], 4
          %s183 = int_to_ptr.vmem [resolvable:$true] %s182
          %188 = dma.hbm_to_vmem [thread:$0]  %s181, 256, %s183, [#allocation6], 128, 128, 8
        $region16: #{tpu_custom_call.1} parent=11 // pred_fallthru
          _
        // Predicated region
        $region17: #{tpu_custom_call.1} parent=11 // pred_check
          %p189 = pneg %p90
        $region18: #{tpu_custom_call.1} parent=11 // pred_check_branch
          %191 = sbr.rel (%p189) target = $region20
        $region19: #{tpu_custom_call.1} parent=11 // pred_region
          %s193 = ssub.s32 512, 512
          %194 = vsyncadd [#allocation9], %s193
          %s195 = smul.addr %s30, 128
          %s196 = scalar_lea.hbm %s2, %s195
          %s197 = sshll.u32 [#allocation8], 4
          %s198 = int_to_ptr.vmem [resolvable:$true] %s197
          %203 = dma.hbm_to_vmem [thread:$0]  %s196, 512, %s198, [#allocation9], 128, 128, 8
        $region20: #{tpu_custom_call.1} parent=11 // pred_fallthru
          _
        // Predicated region
        $region21: #{tpu_custom_call.1} parent=11 // pred_check
          %p204 = pneg %p111
        $region22: #{tpu_custom_call.1} parent=11 // pred_check_branch
          %206 = sbr.rel (%p204) target = $region24
        $region23: #{tpu_custom_call.1} parent=11 // pred_region
          %s208 = ssub.s32 32, 32
          %209 = vsyncadd [#allocation9], %s208
          %s211 = sshll.u32 [#allocation10], 4
          %s212 = int_to_ptr.vmem [resolvable:$true] %s211
          %214 = dma.hbm_to_vmem [thread:$0]  %s3, 32, %s212, [#allocation9]
        $region24: #{tpu_custom_call.1} parent=11 // pred_fallthru
          _
        // Predicated region
        $region25: #{tpu_custom_call.1} parent=11 // pred_check
          %p215 = pneg %p132
        $region26: #{tpu_custom_call.1} parent=11 // pred_check_branch
          %217 = sbr.rel (%p215) target = $region28
        $region27: #{tpu_custom_call.1} parent=11 // pred_region
          %s219 = ssub.s32 512, 512
          %220 = vsyncadd [#allocation12], %s219
          %s221 = sshll.u32 [#allocation11], 4
          %s222 = int_to_ptr.vmem [resolvable:$true] %s221
          %227 = dma.hbm_to_vmem [thread:$0]  %s4, 512, %s222, [#allocation12], 128, 128, 8
        $region28: #{tpu_custom_call.1} parent=11 // pred_fallthru
          _
      $region12: #{tpu_custom_call.1} parent=5 // pred_fallthru
        _
      %p228 = scmp.lt.s32.totalorder %s19, 100
      // Predicated region
      $region29: #{tpu_custom_call.1} parent=5 // pred_check
        %p229 = pneg %p228
      $region30: #{tpu_custom_call.1} parent=5 // pred_check_branch
        %231 = sbr.rel (%p229) target = $region32
      $region31: #{tpu_custom_call.1} parent=5 // pred_region
        _
      $region32: #{tpu_custom_call.1} parent=5 // pred_fallthru
        _
      %p232 = scmp.le.s32.totalorder 1, %s19
      %p233 = scmp.lt.s32.totalorder %s19, 101
      %p234 = pnand %p232, %p233
      %p235 = pneg %p234
      // Predicated region
      $region33: #{tpu_custom_call.1} parent=5 // pred_check
        _
      $region34: #{tpu_custom_call.1} parent=5 // pred_check_branch
        %237 = sbr.rel (%p234) target = $region36
      $region35: #{tpu_custom_call.1} parent=5 // pred_region
        %s238 = ssub.s32 %s19, 1
        // Predicated region
        $region37: #{tpu_custom_call.1} parent=35 // pred_check
          %p239 = pneg %p64
        $region38: #{tpu_custom_call.1} parent=35 // pred_check_branch
          %241 = sbr.rel (%p239) target = $region40
        $region39: #{tpu_custom_call.1} parent=35 // pred_region
          %242 = dma.done [#allocation6], 256
        $region40: #{tpu_custom_call.1} parent=35 // pred_fallthru
          _
        // Predicated region
        $region41: #{tpu_custom_call.1} parent=35 // pred_check
          %p243 = pneg %p90
        $region42: #{tpu_custom_call.1} parent=35 // pred_check_branch
          %245 = sbr.rel (%p243) target = $region44
        $region43: #{tpu_custom_call.1} parent=35 // pred_region
          %246 = dma.done [#allocation9], 512
        $region44: #{tpu_custom_call.1} parent=35 // pred_fallthru
          _
        // Predicated region
        $region45: #{tpu_custom_call.1} parent=35 // pred_check
          %p247 = pneg %p111
        $region46: #{tpu_custom_call.1} parent=35 // pred_check_branch
          %249 = sbr.rel (%p247) target = $region48
        $region47: #{tpu_custom_call.1} parent=35 // pred_region
          %250 = dma.done [#allocation9], 32
        $region48: #{tpu_custom_call.1} parent=35 // pred_fallthru
          _
        // Predicated region
        $region49: #{tpu_custom_call.1} parent=35 // pred_check
          %p251 = pneg %p132
        $region50: #{tpu_custom_call.1} parent=35 // pred_check_branch
          %253 = sbr.rel (%p251) target = $region52
        $region51: #{tpu_custom_call.1} parent=35 // pred_region
          %254 = dma.done [#allocation12], 512
        $region52: #{tpu_custom_call.1} parent=35 // pred_fallthru
          _
        %p255 = pneg %p64
        %p256 = pneg %p61
        %p257 = pneg %p90
        %p258 = pneg %p87
        %p259 = pneg %p111
        %p260 = pneg %p108
        %p261 = pneg %p132
        %p262 = pneg %p129
        %p263 = pneg %p158
        %p264 = pneg %p155
        %s265 = smul.u32 2, %s29
        %p267 = scmp.eq.s32.totalorder %s30, 0
        %p268 = scmp.eq.s32.totalorder %s31, 0
        %p269 = pnand %p267, %p268
        %p270 = pneg %p269
        // Predicated region
        $region53: #{tpu_custom_call.1} parent=35 // pred_check
          _
        $region54: #{tpu_custom_call.1} parent=35 // pred_check_branch
          %272 = sbr.rel (%p269) target = $region56
        $region55: #{tpu_custom_call.1} parent=35 // pred_region
          %273 = vst [vmem:[#allocation13] sm:$0xff] 0.0
        $region56: #{tpu_custom_call.1} parent=35 // pred_fallthru
          _
        // Predicated region
        $region57: #{tpu_custom_call.1} parent=35 // pred_check
          %p274 = pneg %p268
        $region58: #{tpu_custom_call.1} parent=35 // pred_check_branch
          %276 = sbr.rel (%p274) target = $region60
        $region59: #{tpu_custom_call.1} parent=35 // pred_region
          %v277 = vld [vmem:[#allocation5] sm:$0xff]
          %v278 = vld [vmem:[#allocation5 + $0x8] sm:$0xff]
          %v279 = vld [vmem:[#allocation8] sm:$0xff]
          %v280 = vld [vmem:[#allocation8 + $0x8] sm:$0xff]
          %v281 = vld [vmem:[#allocation8 + $0x10] sm:$0xff]
          %v282 = vld [vmem:[#allocation8 + $0x18] sm:$0xff]
          %vm283 = vcmask 261120
          %v285 = vsel %vm283, %v277, 0
          %v288 = vsel %vm283, %v278, 0
          %290 = vmatprep.subr.mxu0 0.0
          %291 = vmatpush1.msra.mxu0 %v279
          %292 = vmatprep.subr.mxu0 0.0
          %293 = vmatpush1.msra.mxu0 %v280
          %294 = vmatprep.subr.mxu0 0.0
          %295 = vmatpush1.msra.mxu0 %v281
          %296 = vmatprep.subr.mxu0 0.0
          %297 = vmatpush1.msra.mxu0 %v282
          %298 = vmatprep.subr.mxu0 0.0
          %299 = vmatpush1.msra.mxu0 0.0
          %300 = vmatprep.subr.mxu0 0.0
          %301 = vmatpush1.msra.mxu0 0.0
          %302 = vmatprep.subr.mxu0 0.0
          %303 = vmatpush1.msra.mxu0 0.0
          %304 = vmatprep.subr.mxu0 0.0
          %305 = vmatpush1.msra.mxu0 0.0
          %306 = vmatprep.subr.mxu0 0.0
          %307 = vmatpush1.msra.mxu0 0.0
          %308 = vmatprep.subr.mxu0 0.0
          %309 = vmatpush1.msra.mxu0 0.0
          %310 = vmatprep.subr.mxu0 0.0
          %311 = vmatpush1.msra.mxu0 0.0
          %312 = vmatprep.subr.mxu0 0.0
          %313 = vmatpush1.msra.mxu0 0.0
          %314 = vmatprep.subr.mxu0 0.0
          %315 = vmatpush1.msra.mxu0 0.0
          %316 = vmatprep.subr.mxu0 0.0
          %317 = vmatpush1.msra.mxu0 0.0
          %318 = vmatprep.subr.mxu0 0.0
          %319 = vmatpush1.msra.mxu0 0.0
          %320 = vmatprep.subr.mxu0 0.0
          %321 = vmatpush1.msra.mxu0 0.0
          %322 = vmatprep.subr.mxu0 0.0
          %323 = vmatpush1.msra.mxu0 0.0
          %324 = vmatprep.subr.mxu0 0.0
          %325 = vmatpush1.msra.mxu0 0.0
          %326 = vmatprep.subr.mxu0 0.0
          %327 = vmatpush1.msra.mxu0 0.0
          %328 = vmatprep.subr.mxu0 0.0
          %329 = vmatpush1.msra.mxu0 0.0
          %330 = vmatprep.subr.mxu0 0.0
          %331 = vmatpush1.msra.mxu0 0.0
          %332 = vmatprep.subr.mxu0 0.0
          %333 = vmatpush1.msra.mxu0 0.0
          %334 = vmatprep.subr.mxu0 0.0
          %335 = vmatpush1.msra.mxu0 0.0
          %336 = vmatprep.subr.mxu0 0.0
          %337 = vmatpush1.msra.mxu0 0.0
          %338 = vmatprep.subr.mxu0 0.0
          %339 = vmatpush1.msra.mxu0 0.0
          %340 = vmatprep.subr.mxu0 0.0
          %341 = vmatpush1.msra.mxu0 0.0
          %342 = vmatprep.subr.mxu0 0.0
          %343 = vmatpush1.msra.mxu0 0.0
          %344 = vmatprep.subr.mxu0 0.0
          %345 = vmatpush1.msra.mxu0 0.0
          %346 = vmatprep.subr.mxu0 0.0
          %347 = vmatpush1.msra.mxu0 0.0
          %348 = vmatprep.subr.mxu0 0.0
          %349 = vmatpush1.msra.mxu0 0.0
          %350 = vmatprep.subr.mxu0 0.0
          %351 = vmatpush1.msra.mxu0 0.0
          %352 = vmatprep.subr.mxu0 0.0
          %353 = vmatpush1.msra.mxu0 0.0
          %354 = vmatprep.mubr.f32.mxu0 0.0
          %355 = vmatmul.mubr.f32.gmra.mrb[0].mxu0 %v285
          %v356 = vpop.f32.mrb[0].mxu0
          %v357 = vadd.f32 0.0, %v356
          %v358 = vpop.f32.mrb[0].mxu0
          %359 = vmatprep.mubr.f32.mxu0 0.0
          %360 = vmatmul.mubr.f32.gmra.mrb[0].mxu0 %v288
          %v361 = vpop.f32.mrb[0].mxu0
          %v362 = vadd.f32 0.0, %v361
          %v363 = vpop.f32.mrb[0].mxu0
          %364 = vdwg.mxu0
          %365 = vst.msk [vmem:[#allocation2] sm:$0xff] %vm283, %v357
          %366 = vst.msk [vmem:[#allocation2 + $0x8] sm:$0xff] %vm283, %v362
        $region60: #{tpu_custom_call.1} parent=35 // pred_fallthru
          _
        %s367 = sld [smem:[#allocation4 + %s31]]
        %s368 = sshra.s32 %s31, 7
        %s369 = sand.u32 %s31, 127
        %s370 = sadd.s32 %s368, 1
        %s371 = smul.u32 %s370, 128
        %s372 = sshra.s32 %s31, 7
        %s373 = sand.u32 %s31, 127
        %s374 = sadd.s32 %s371, %s373
        %s375 = sld [smem:[#allocation4 + %s374]]
        %s376 = sadd.s32 %s368, 2
        %s377 = smul.u32 %s376, 128
        %s378 = sadd.s32 %s377, %s373
        %s379 = sld [smem:[#allocation4 + %s378]]
        %s380 = sadd.s32 %s368, 3
        %s381 = smul.u32 %s380, 128
        %s382 = sadd.s32 %s381, %s373
        %s383 = sld [smem:[#allocation4 + %s382]]
        %s384 = sadd.s32 %s368, 4
        %s385 = smul.u32 %s384, 128
        %s386 = sadd.s32 %s385, %s373
        %s387 = sld [smem:[#allocation4 + %s386]]
        %s388 = sadd.s32 %s368, 5
        %s389 = smul.u32 %s388, 128
        %s390 = sadd.s32 %s389, %s373
        %s391 = sld [smem:[#allocation4 + %s390]]
        %s392 = sadd.s32 %s368, 6
        %s393 = smul.u32 %s392, 128
        %s394 = sadd.s32 %s393, %s373
        %s395 = sld [smem:[#allocation4 + %s394]]
        %s396 = sadd.s32 %s368, 7
        %s397 = smul.u32 %s396, 128
        %s398 = sadd.s32 %s397, %s373
        %s399 = sld [smem:[#allocation4 + %s398]]
        %s400 = sadd.s32 %s368, 8
        %s401 = smul.u32 %s400, 128
        %s402 = sadd.s32 %s401, %s373
        %s403 = sld [smem:[#allocation4 + %s402]]
        %v404 = vld [vmem:[#allocation10] sm:$0x1]
        %v405 = vld [vmem:[#allocation10 + $0x1] sm:$0x1]
        %v406 = vstv %s367
        %vm407 = vcmp.gt.f32.partialorder %v404, %v406
        %v408 = vstv %s375
        %v409 = vmul.f32 %v404, %v408
        %v410 = vsel %vm407, %v409, 1.0
        %s411 = ssub.f32 0.0, %s367
        %v412 = vstv %s411
        %vm413 = vcmp.lt.f32.partialorder %v405, %v412
        %s414 = ssub.f32 0.0, %s375
        %v415 = vstv %s414
        %v416 = vmul.f32 %v405, %v415
        %v417 = vsel %vm413, %v416, 1.0
        %v418 = vmax.f32 %v410, %v417
        %v419 = vstv %s379
        %v420 = vmul.f32 %v418, %v419
        %v421 = vrcp.pop %v420
        %v422 = vld [vmem:[#allocation11] sm:$0xff]
        %v423 = vld [vmem:[#allocation11 + $0x8] sm:$0xff]
        %v424 = vld [vmem:[#allocation11 + $0x10] sm:$0xff]
        %v425 = vld [vmem:[#allocation11 + $0x18] sm:$0xff]
        %vm426 = vcmp.gt.f32.partialorder %v422, %v406
        %vm427 = vcmp.gt.f32.partialorder %v423, %v406
        %vm428 = vcmp.gt.f32.partialorder %v424, %v406
        %vm429 = vcmp.gt.f32.partialorder %v425, %v406
        %v430 = vmul.f32 %v422, %v408
        %v431 = vmul.f32 %v423, %v408
        %v432 = vmul.f32 %v424, %v408
        %v433 = vmul.f32 %v425, %v408
        %v434 = vsel %vm426, %v430, 1.0
        %v435 = vsel %vm427, %v431, 1.0
        %v436 = vsel %vm428, %v432, 1.0
        %v437 = vsel %vm429, %v433, 1.0
        %vm438 = vcmp.lt.f32.partialorder %v422, %v412
        %vm439 = vcmp.lt.f32.partialorder %v423, %v412
        %vm440 = vcmp.lt.f32.partialorder %v424, %v412
        %vm441 = vcmp.lt.f32.partialorder %v425, %v412
        %v442 = vmul.f32 %v422, %v415
        %v443 = vmul.f32 %v423, %v415
        %v444 = vmul.f32 %v424, %v415
        %v445 = vmul.f32 %v425, %v415
        %v446 = vsel %vm438, %v442, 1.0
        %v447 = vsel %vm439, %v443, 1.0
        %v448 = vsel %vm440, %v444, 1.0
        %v449 = vsel %vm441, %v445, 1.0
        %454 = vrot.lane.b32.xlu0 %v446, 127
        %v455 = vpop.permute.xlu0 %454
        %456 = vrot.lane.b32.xlu0 %v447, 127
        %v457 = vpop.permute.xlu0 %456
        %458 = vrot.lane.b32.xlu0 %v448, 127
        %v459 = vpop.permute.xlu0 %458
        %460 = vrot.lane.b32.xlu0 %v449, 127
        %v461 = vpop.permute.xlu0 %460
        %v466 = vmax.f32 %v434, %v455
        %v467 = vmax.f32 %v435, %v457
        %v468 = vmax.f32 %v436, %v459
        %v469 = vmax.f32 %v437, %v461
        %v470 = vstv %s391
        %v471 = vmul.f32 %v466, %v470
        %v472 = vmul.f32 %v467, %v470
        %v473 = vmul.f32 %v468, %v470
        %v474 = vmul.f32 %v469, %v470
        %v475 = vld [vmem:[#allocation5] sm:$0xff]
        %v476 = vld [vmem:[#allocation5 + $0x8] sm:$0xff]
        %v477 = vlaneseq
        %v478 = vshrl.u32 %v477, 7
        %v479 = vsub.s32 0, %v478
        %v480 = vrot.slane %v421, %v479
        %v481 = vmul.f32 %v475, %v480
        %v482 = vmul.f32 %v476, %v480
        %v483 = vround.ne.pseudo %v481
        %v484 = vround.ne.pseudo %v482
        %v485 = vstv %s383
        %v486 = vmax.f32 %v485, %v483
        %v487 = vmax.f32 %v485, %v484
        %v488 = vstv %s387
        %v489 = vmin.f32 %v488, %v486
        %v490 = vmin.f32 %v488, %v487
        %v491 = vld [vmem:[#allocation8] sm:$0xff]
        %v492 = vld [vmem:[#allocation8 + $0x8] sm:$0xff]
        %v493 = vld [vmem:[#allocation8 + $0x10] sm:$0xff]
        %v494 = vld [vmem:[#allocation8 + $0x18] sm:$0xff]
        %496 = vset.pattern.permute.xlu0 0
        %497 = vperm.xlu0 %496, %v471
        %v498 = vpop.permute.xlu0 %497
        %501 = vset.pattern.permute.xlu0 0
        %502 = vperm.xlu0 %501, %v472
        %v503 = vpop.permute.xlu0 %502
        %506 = vset.pattern.permute.xlu0 0
        %507 = vperm.xlu0 %506, %v473
        %v508 = vpop.permute.xlu0 %507
        %511 = vset.pattern.permute.xlu0 0
        %512 = vperm.xlu0 %511, %v474
        %v513 = vpop.permute.xlu0 %512
        %v515 = vmul.f32 %v491, %v498
        %v516 = vmul.f32 %v492, %v503
        %v517 = vmul.f32 %v493, %v508
        %v518 = vmul.f32 %v494, %v513
        %v519 = vround.ne.pseudo %v515
        %v520 = vround.ne.pseudo %v516
        %v521 = vround.ne.pseudo %v517
        %v522 = vround.ne.pseudo %v518
        %v523 = vstv %s395
        %v524 = vmax.f32 %v523, %v519
        %v525 = vmax.f32 %v523, %v520
        %v526 = vmax.f32 %v523, %v521
        %v527 = vmax.f32 %v523, %v522
        %v528 = vstv %s399
        %v529 = vmin.f32 %v528, %v524
        %v530 = vmin.f32 %v528, %v525
        %v531 = vmin.f32 %v528, %v526
        %v532 = vmin.f32 %v528, %v527
        %v533 = vpack.c.bf16 %v490, %v489
        %v534 = vpack.c.bf16 %v530, %v529
        %v535 = vpack.c.bf16 %v532, %v531
        %vm536 = vcmask 261120
        %v538 = vsel %vm536, %v533, 0
        %540 = vmatprep.subr.bf16.mxu0 0
        %541 = vmatpush1.bf16.msra.mxu0 %v534
        %542 = vmatprep.subr.bf16.mxu0 0
        %543 = vmatpush1.bf16.msra.mxu0 %v535
        %544 = vmatprep.subr.bf16.mxu0 0
        %545 = vmatpush1.bf16.msra.mxu0 0
        %546 = vmatprep.subr.bf16.mxu0 0
        %547 = vmatpush1.bf16.msra.mxu0 0
        %548 = vmatprep.subr.bf16.mxu0 0
        %549 = vmatpush1.bf16.msra.mxu0 0
        %550 = vmatprep.subr.bf16.mxu0 0
        %551 = vmatpush1.bf16.msra.mxu0 0
        %552 = vmatprep.subr.bf16.mxu0 0
        %553 = vmatpush1.bf16.msra.mxu0 0
        %554 = vmatprep.subr.bf16.mxu0 0
        %555 = vmatpush1.bf16.msra.mxu0 0
        %556 = vmatprep.subr.bf16.mxu0 0
        %557 = vmatpush1.bf16.msra.mxu0 0
        %558 = vmatprep.subr.bf16.mxu0 0
        %559 = vmatpush1.bf16.msra.mxu0 0
        %560 = vmatprep.subr.bf16.mxu0 0
        %561 = vmatpush1.bf16.msra.mxu0 0
        %562 = vmatprep.subr.bf16.mxu0 0
        %563 = vmatpush1.bf16.msra.mxu0 0
        %564 = vmatprep.subr.bf16.mxu0 0
        %565 = vmatpush1.bf16.msra.mxu0 0
        %566 = vmatprep.subr.bf16.mxu0 0
        %567 = vmatpush1.bf16.msra.mxu0 0
        %568 = vmatprep.subr.bf16.mxu0 0
        %569 = vmatpush1.bf16.msra.mxu0 0
        %570 = vmatprep.subr.bf16.mxu0 0
        %571 = vmatpush1.bf16.msra.mxu0 0
        %572 = vmatprep.mubr.bf16.mxu0 0
        %573 = vmatmul.mubr.bf16.gmra.mrb[0].mxu0 %v538
        %v574 = vpop.f32.mrb[0].mxu0
        %v575 = vadd.f32 0.0, %v574
        %v576 = vpop.f32.mrb[0].mxu0
        %v577 = vpop.f32.mrb[0].mxu0
        %v578 = vadd.f32 0.0, %v577
        %v579 = vpop.f32.mrb[0].mxu0
        %580 = vdwg.mxu0
        %v581 = vstv %s403
        %v582 = vmul.f32 %v575, %v581
        %v583 = vmul.f32 %v578, %v581
        %v584 = vld [vmem:[#allocation2] sm:$0xff]
        %v585 = vld [vmem:[#allocation2 + $0x8] sm:$0xff]
        %v586 = vsub.f32 %v582, %v584
        %v587 = vsub.f32 %v583, %v585
        %v588 = vmul.f32 %v586, %v586
        %v589 = vmul.f32 %v587, %v587
        %v590 = vsel %vm536, %v588, 0.0
        %v591 = vsel %vm536, %v589, 0.0
        %v592 = vadd.f32 %v590, %v591
        %593 = vadd.xlane.f32.xlu0 %v592
        %v594 = vpop.xlane.xlu0 %593
        %v595 = vrot.slane %v594, 4
        %v596 = vadd.f32 %v594, %v595
        %v597 = vrot.slane %v596, 2
        %v598 = vadd.f32 %v596, %v597
        %v599 = vrot.slane %v598, 1
        %v600 = vadd.f32 %v598, %v599
        %s601 = vtos %v600
        %s602 = smul.f32 %s601, 0.0625
        %v603 = vlaneseq
        %v604 = vand.u32 %v603, 127
        %v605 = vld [vmem:[#allocation13] sm:$0xff]
        %v606 = vstv %s31
        %vm607 = vcmp.eq.s32.totalorder %v604, %v606
        %v608 = vstv %s602
        %v609 = vsel %vm607, %v608, 0.0
        %v610 = vadd.f32 %v605, %v609
        %611 = vst [vmem:[#allocation13] sm:$0xff] %v610
        // Predicated region
        $region61: #{tpu_custom_call.1} parent=35 // pred_check
          %p612 = pneg %p155
        $region62: #{tpu_custom_call.1} parent=35 // pred_check_branch
          %614 = sbr.rel (%p612) target = $region64
        $region63: #{tpu_custom_call.1} parent=35 // pred_region
          %s616 = ssub.s32 128, 128
          %617 = vsyncadd [#allocation7], %s616
          %s618 = smul.addr %s29, 128
          %s619 = scalar_lea.hbm %s5, %s618
          %s621 = sshll.u32 [#allocation13], 4
          %s622 = int_to_ptr.vmem [resolvable:$true] %s621
          %624 = dma.vmem_to_hbm [thread:$0]  %s622, 128, %s619, [#allocation7]
        $region64: #{tpu_custom_call.1} parent=35 // pred_fallthru
          _
        // Predicated region
        $region65: #{tpu_custom_call.1} parent=35 // pred_check
          %p625 = pneg %p155
        $region66: #{tpu_custom_call.1} parent=35 // pred_check_branch
          %627 = sbr.rel (%p625) target = $region68
        $region67: #{tpu_custom_call.1} parent=35 // pred_region
          %628 = dma.done [#allocation7], 128
        $region68: #{tpu_custom_call.1} parent=35 // pred_fallthru
          _
      $region36: #{tpu_custom_call.1} parent=5 // pred_fallthru
        _
      %p629 = scmp.le.s32.totalorder 2, %s19
      // Predicated region
      $region69: #{tpu_custom_call.1} parent=5 // pred_check
        %p630 = pneg %p629
      $region70: #{tpu_custom_call.1} parent=5 // pred_check_branch
        %632 = sbr.rel (%p630) target = $region72
      $region71: #{tpu_custom_call.1} parent=5 // pred_region
        %s633 = ssub.s32 %s19, 2
      $region72: #{tpu_custom_call.1} parent=5 // pred_fallthru
        _
    $region6: #{tpu_custom_call.1} parent=1 // loop_footer
      %s23 = sadd.s32 1, %s19
    $region7: #{tpu_custom_call.1} parent=1 // loop_footer_branch
      %18 = sbr.rel target = $region3
    $region8: #{tpu_custom_call.1} parent=1 // loop_exit
      _
    %634 = vsyncpa [#allocation6], 1
    %s635 = scalar_lea.sflag [#allocation6], 1
    %636 = vsyncpa %s635, 1
    %637 = vsyncpa [#allocation9], 1
    %638 = vsyncpa [#allocation12], 1
    %639 = vsyncpa [#allocation7], 1
    %s640 = scalar_lea.sflag [#allocation7], 1
    %641 = vsyncpa %s640, 1

</llo_original>
